<compile_context>
chip_gen: v7x
topology: tpu7x:2x2x1
jax: 0.10.0
libtpu: 0.0.40
codegen_flags: <defaults>
</compile_context>

<pallas_src>
import functools

import jax
import jax.numpy as jnp
from jax.experimental import pallas as pl
from jax.experimental.pallas import tpu as pltpu


# ----------------------------------------------------------------------------
# Kernel: one (tile_rows, lanes) tile per grid step.  Grid = (cores, tiles).
# acc_ref is a resident VMEM accumulator (per core); out_ref is a per-core
# (1,1) SMEM partial-sum block written only on the final step of that core.
# ----------------------------------------------------------------------------
def _vfl_kernel(alpha, gamma, x_ref, z_ref, y_ref, out_ref, acc_ref):
    i = pl.program_id(1)

    @pl.when(i == 0)
    def _init():
        acc_ref[...] = jnp.zeros_like(acc_ref)

    f32 = jnp.float32
    x = x_ref[...].astype(f32)          # pred_score (logits)
    z = z_ref[...].astype(f32)          # gt_score
    y = y_ref[...].astype(f32)          # label

    # Numerically stable sigmoid; `e` is reused by the stable BCE log term.
    e = jnp.exp(-jnp.abs(x))
    inv = 1.0 / (1.0 + e)
    sig = jnp.where(x >= 0.0, inv, e * inv)

    # Specialize common gammas to multiplies (avoid generic pow = exp+log).
    if gamma == 2.0:
        sig_pow = sig * sig
    elif gamma == 1.0:
        sig_pow = sig
    elif gamma == 3.0:
        sig_pow = sig * sig * sig
    elif gamma == 0.5:
        sig_pow = jnp.sqrt(sig)
    elif gamma == 1.5:
        sig_pow = sig * jnp.sqrt(sig)
    else:
        sig_pow = sig ** gamma

    weight = alpha * sig_pow * (1.0 - y) + z * y

    # BCEWithLogits (stable): max(x,0) - x*z + log1p(exp(-|x|))
    bce = jnp.maximum(x, 0.0) - x * z + jnp.log1p(e)

    acc_ref[...] += bce * weight        # pure VALU, hides under the DMAs

    @pl.when(i == pl.num_programs(1) - 1)
    def _finalize():
        out_ref[0, 0] = jnp.sum(acc_ref[...])


# ----------------------------------------------------------------------------
# Wrapper: flatten -> (minimal) zero-contribution pad -> lane-dense reshape
# -> (cores, tiles) grid -> sum the per-core partials.
# ----------------------------------------------------------------------------
def varifocal_loss(pred_score, gt_score, label, alpha=0.75, gamma=2.0, *,
                   lanes=512, tile_rows=512, num_cores=2):
    x = jnp.ravel(pred_score)
    z = jnp.ravel(gt_score)
    y = jnp.ravel(label)
    n = x.shape[0]

    # Clamp the tile to the data so tiny inputs don't pad up to a huge tile.
    rows_needed = -(-n // lanes)
    tile_rows = max(8, min(int(tile_rows), -(-rows_needed // 8) * 8))
    num_tiles = -(-rows_needed // tile_rows)
    if num_tiles < num_cores:
        num_cores = 1
    num_tiles = -(-num_tiles // num_cores) * num_cores
    tiles_per_core = num_tiles // num_cores
    rows = num_tiles * tile_rows

    pad = rows * lanes - n
    if pad:
        # pred=0, gt=0, label=1  ->  weight == 0  ->  zero loss contribution.
        x = jnp.pad(x, (0, pad))
        z = jnp.pad(z, (0, pad))
        y = jnp.pad(y, (0, pad), constant_values=1)

    # Native dtypes are kept; the kernel casts to f32 on VMEM-resident data.
    x2 = x.reshape(rows, lanes)
    z2 = z.reshape(rows, lanes)
    y2 = y.reshape(rows, lanes)

    tile_spec = pl.BlockSpec((tile_rows, lanes),
                             lambda c, i: (c * tiles_per_core + i, 0))

    n_elems = rows * lanes
    in_bytes = (x2.size * x2.dtype.itemsize + z2.size * z2.dtype.itemsize
                + y2.size * y2.dtype.itemsize)

    partials = pl.pallas_call(
        functools.partial(_vfl_kernel, float(alpha), float(gamma)),
        out_shape=jax.ShapeDtypeStruct((num_cores, 1), jnp.float32),
        grid=(num_cores, tiles_per_core),
        in_specs=[tile_spec, tile_spec, tile_spec],
        out_specs=pl.BlockSpec((1, 1), lambda c, i: (c, 0),
                               memory_space=pltpu.MemorySpace.SMEM),
        scratch_shapes=[pltpu.VMEM((tile_rows, lanes), jnp.float32)],
        compiler_params=pltpu.CompilerParams(
            dimension_semantics=("parallel", "arbitrary")),
        cost_estimate=pl.CostEstimate(
            flops=12 * n_elems,
            transcendentals=2 * n_elems,
            bytes_accessed=in_bytes + num_cores * 4),
    )(x2, z2, y2)

    return jnp.sum(partials)


# ----------------------------------------------------------------------------
# Pure-JAX reference (mirrors the PyTorch forward)
# ----------------------------------------------------------------------------
def _reference(pred_score, gt_score, label, alpha=0.75, gamma=2.0):
    x = pred_score.astype(jnp.float32)
    z = gt_score.astype(jnp.float32)
    y = label.astype(jnp.float32)
    weight = alpha * jax.nn.sigmoid(x) ** gamma * (1.0 - y) + z * y
    bce = jnp.maximum(x, 0.0) - x * z + jnp.log1p(jnp.exp(-jnp.abs(x)))
    return jnp.sum(bce * weight)


# ----------------------------------------------------------------------------
if __name__ == "__main__":
    B, N, C = 2, 1024, 20     # batch, anchors, classes (small demo shapes)

    key = jax.random.PRNGKey(0)
    k1, k2, k3 = jax.random.split(key, 3)
    pred_score = jax.random.normal(k1, (B, N, C), jnp.float32) * 2.0
    label = (jax.random.uniform(k2, (B, N, C), jnp.float32) > 0.9).astype(jnp.float32)
    gt_score = jax.random.uniform(k3, (B, N, C), jnp.float32) * label

    loss = varifocal_loss(pred_score, gt_score, label)
    jax.block_until_ready(loss)

    ref = _reference(pred_score, gt_score, label)
    assert jnp.allclose(loss, ref, rtol=1e-4, atol=1e-3), (float(loss), float(ref))

    print("KERNEL_OK")
</pallas_src>

<mosaic_0001>
module attributes {stable_mosaic.version = 11 : i64} {
  func.func @_vfl_kernel(%arg0: i32, %arg1: i32, %arg2: memref<80x512xf32, #tpu.memory_space<vmem>>, %arg3: memref<80x512xf32, #tpu.memory_space<vmem>>, %arg4: memref<80x512xf32, #tpu.memory_space<vmem>>, %arg5: memref<1x1xf32, #tpu.memory_space<smem>>, %arg6: memref<80x512xf32, #tpu.memory_space<vmem>>) attributes {dimension_semantics = [#tpu.dimension_semantics<parallel>, #tpu.dimension_semantics<arbitrary>], iteration_bounds = array<i64: 1, 1>, scalar_prefetch = 0 : i64, scratch_operands = 1 : i64, tpu.core_type = #tpu.core_type<tc>, window_params = [{transform_indices = @transform_0, window_bounds = array<i64: 80, 512>}, {transform_indices = @transform_1, window_bounds = array<i64: 80, 512>}, {transform_indices = @transform_2, window_bounds = array<i64: 80, 512>}, {transform_indices = @transform_3, window_bounds = array<i64: 1, 1>}]} {
    %c0_i32 = arith.constant 0 : i32
    %0 = arith.cmpi eq, %arg1, %c0_i32 : i32
    %1 = arith.extui %0 : i1 to i32
    %c0_i32_0 = arith.constant 0 : i32
    %2 = arith.cmpi ne, %1, %c0_i32_0 : i32
    scf.if %2 {
      %cst_18 = arith.constant 0.000000e+00 : f32
      %39 = vector.broadcast %cst_18 : f32 to vector<80x512xf32>
      %c0_19 = arith.constant 0 : index
      %c0_20 = arith.constant 0 : index
      %40 = vector.load %arg6[%c0_19, %c0_20] : memref<80x512xf32, #tpu.memory_space<vmem>>, vector<80x512xf32>
      tpu.vector_store %arg6[%c0_19, %c0_20], %39 {strides = array<i32>} : memref<80x512xf32, #tpu.memory_space<vmem>>, vector<80x512xf32>,
    } else {
    }
    %c0 = arith.constant 0 : index
    %c0_1 = arith.constant 0 : index
    %3 = vector.load %arg2[%c0, %c0_1] : memref<80x512xf32, #tpu.memory_space<vmem>>, vector<80x512xf32>
    %c0_2 = arith.constant 0 : index
    %c0_3 = arith.constant 0 : index
    %4 = vector.load %arg3[%c0_2, %c0_3] : memref<80x512xf32, #tpu.memory_space<vmem>>, vector<80x512xf32>
    %c0_4 = arith.constant 0 : index
    %c0_5 = arith.constant 0 : index
    %5 = vector.load %arg4[%c0_4, %c0_5] : memref<80x512xf32, #tpu.memory_space<vmem>>, vector<80x512xf32>
    %6 = math.absf %3 : vector<80x512xf32>
    %cst = arith.constant 0.000000e+00 : f32
    %7 = vector.broadcast %cst : f32 to vector<80x512xf32>
    %8 = arith.subf %7, %6 : vector<80x512xf32>
    %9 = math.exp %8 : vector<80x512xf32>
    %cst_6 = arith.constant 1.000000e+00 : f32
    %10 = vector.broadcast %cst_6 : f32 to vector<80x512xf32>
    %11 = arith.addf %10, %9 : vector<80x512xf32>
    %cst_7 = arith.constant 1.000000e+00 : f32
    %12 = vector.broadcast %cst_7 : f32 to vector<80x512xf32>
    %13 = arith.divf %12, %11 : vector<80x512xf32>
    %cst_8 = arith.constant 0.000000e+00 : f32
    %14 = vector.broadcast %cst_8 : f32 to vector<80x512xf32>
    %15 = arith.cmpf oge, %3, %14 : vector<80x512xf32>
    %16 = arith.mulf %9, %13 : vector<80x512xf32>
    %17 = arith.select %15, %13, %16 : vector<80x512xi1>, vector<80x512xf32>
    %18 = arith.mulf %17, %17 : vector<80x512xf32>
    %cst_9 = arith.constant 7.500000e-01 : f32
    %19 = vector.broadcast %cst_9 : f32 to vector<80x512xf32>
    %20 = arith.mulf %19, %18 : vector<80x512xf32>
    %cst_10 = arith.constant 1.000000e+00 : f32
    %21 = vector.broadcast %cst_10 : f32 to vector<80x512xf32>
    %22 = arith.subf %21, %5 : vector<80x512xf32>
    %23 = arith.mulf %20, %22 : vector<80x512xf32>
    %24 = arith.mulf %4, %5 : vector<80x512xf32>
    %25 = arith.addf %23, %24 : vector<80x512xf32>
    %cst_11 = arith.constant 0.000000e+00 : f32
    %26 = vector.broadcast %cst_11 : f32 to vector<80x512xf32>
    %27 = arith.maximumf %3, %26 : vector<80x512xf32>
    %28 = arith.mulf %3, %4 : vector<80x512xf32>
    %29 = arith.subf %27, %28 : vector<80x512xf32>
    %30 = math.log1p %9 : vector<80x512xf32>
    %31 = arith.addf %29, %30 : vector<80x512xf32>
    %c0_12 = arith.constant 0 : index
    %c0_13 = arith.constant 0 : index
    %32 = vector.load %arg6[%c0_12, %c0_13] : memref<80x512xf32, #tpu.memory_space<vmem>>, vector<80x512xf32>
    %33 = arith.mulf %31, %25 : vector<80x512xf32>
    %34 = arith.addf %32, %33 : vector<80x512xf32>
    %c0_14 = arith.constant 0 : index
    %c0_15 = arith.constant 0 : index
    %35 = vector.load %arg6[%c0_14, %c0_15] : memref<80x512xf32, #tpu.memory_space<vmem>>, vector<80x512xf32>
    tpu.vector_store %arg6[%c0_14, %c0_15], %34 {strides = array<i32>} : memref<80x512xf32, #tpu.memory_space<vmem>>, vector<80x512xf32>,
    %c0_i32_16 = arith.constant 0 : i32
    %36 = arith.cmpi eq, %arg1, %c0_i32_16 : i32
    %37 = arith.extui %36 : i1 to i32
    %c0_i32_17 = arith.constant 0 : i32
    %38 = arith.cmpi ne, %37, %c0_i32_17 : i32
    scf.if %38 {
      %c0_18 = arith.constant 0 : index
      %c0_19 = arith.constant 0 : index
      %39 = vector.load %arg6[%c0_18, %c0_19] : memref<80x512xf32, #tpu.memory_space<vmem>>, vector<80x512xf32>
      %40 = vector.shape_cast %39 : vector<80x512xf32> to vector<1x80x512xf32>
      %cst_20 = arith.constant dense<0.000000e+00> : vector<1xf32>
      %41 = vector.multi_reduction <add>, %40, %cst_20 [1, 2] : vector<1x80x512xf32> to vector<1xf32>
      %42 = vector.shape_cast %41 : vector<1xf32> to vector<1x1x1xf32>
      %43 = vector.extract %42[0, 0, 0] : f32 from vector<1x1x1xf32>
      %c0_21 = arith.constant 0 : index
      %c0_22 = arith.constant 0 : index
      %44 = memref.load %arg5[%c0_21, %c0_22] : memref<1x1xf32, #tpu.memory_space<smem>>
      memref.store %43, %arg5[%c0_21, %c0_22] : memref<1x1xf32, #tpu.memory_space<smem>>
    } else {
    }
    return
  }
  func.func @transform_0(%arg0: i32, %arg1: i32) -> (i32, i32) {
    %c1_i32 = arith.constant 1 : i32
    %0 = arith.muli %arg0, %c1_i32 : i32
    %1 = arith.addi %0, %arg1 : i32
    %c0_i32 = arith.constant 0 : i32
    %c0_i32_0 = arith.constant 0 : i32
    return %1, %c0_i32 : i32, i32
  }
  func.func @transform_1(%arg0: i32, %arg1: i32) -> (i32, i32) {
    %c1_i32 = arith.constant 1 : i32
    %0 = arith.muli %arg0, %c1_i32 : i32
    %1 = arith.addi %0, %arg1 : i32
    %c0_i32 = arith.constant 0 : i32
    %c0_i32_0 = arith.constant 0 : i32
    return %1, %c0_i32 : i32, i32
  }
  func.func @transform_2(%arg0: i32, %arg1: i32) -> (i32, i32) {
    %c1_i32 = arith.constant 1 : i32
    %0 = arith.muli %arg0, %c1_i32 : i32
    %1 = arith.addi %0, %arg1 : i32
    %c0_i32 = arith.constant 0 : i32
    %c0_i32_0 = arith.constant 0 : i32
    return %1, %c0_i32 : i32, i32
  }
  func.func @transform_3(%arg0: i32, %arg1: i32) -> (i32, i32) {
    %c0_i32 = arith.constant 0 : i32
    %c0_i32_0 = arith.constant 0 : i32
    return %arg0, %c0_i32 : i32, i32
  }
}

</mosaic_0001>

<llo_original>
// kernel: tpu_custom_call.1
$region0: #{tpu_custom_call.1}
  #allocation0 [shape = 'u32[]', space=smem, size = 0x4, offset = 0x4, fixed_abs, tag = 'smem constant byte address 0x4 - core index']
  #allocation1 [shape = 'u32[144,128]{1,0:T(1,128)}', space=vmem, size = 0x12000, scoped, tag = 'internal scratch']
  #allocation2 [shape = 'f32[80,512]{1,0:T(8,128)}', space=vmem, size = 0x28000, scoped, tag = 'scratch operand']
  %s0 = inlined_call_operand.hbm [shape: f32[80,512], index: 0, kind: input, shape index: {}]
  %s1 = inlined_call_operand.hbm [shape: f32[80,512], index: 1, kind: input, shape index: {}]
  %s2 = inlined_call_operand.hbm [shape: f32[80,512], index: 2, kind: input, shape index: {}]
  %s3 = inlined_call_operand.hbm [shape: f32[1,1], index: 3, kind: output, shape index: {}]
  %s4 = sld [smem:[#allocation0]]
  $region42: #{tpu_custom_call.1} parent=0
    _
  %s6 = ssub.s32 1, %s4
  %s7 = scalar_select 0, %s6, %s4
  $region1: #{tpu_custom_call.1} parent=0
    #allocation3 [shape = 'u8[163840]{0}', space=vmem, size = 0x28000, scoped, tag = 'input window, operand 0, single buffered']
    #allocation4 [shape = 's32[1]{0}', space=sflag, size = 0x4, scoped, tag = 'scoped memory for tpu_custom_call.1']
    #allocation5 [shape = 's32[1]{0}', space=sflag, size = 0x4, scoped, tag = 'scoped memory for tpu_custom_call.1']
    #allocation6 [shape = 'u8[163840]{0}', space=vmem, size = 0x28000, scoped, tag = 'input window, operand 1, single buffered']
    #allocation7 [shape = 's32[1]{0}', space=sflag, size = 0x4, scoped, tag = 'scoped memory for tpu_custom_call.1']
    #allocation8 [shape = 'u8[163840]{0}', space=vmem, size = 0x28000, scoped, tag = 'input window, operand 2, single buffered']
    #allocation9 [shape = 'u8[512]{0}', space=smem, size = 0x200, scoped, tag = 'output window, operand 0, single buffered']
    %8 = vsyncpa [#allocation4], 0
    %9 = vsyncpa [#allocation7], 0
    %10 = vsyncpa [#allocation5], 0
    // Predicated region
    $region2: #{tpu_custom_call.1} parent=1 // pred_check
      _
    $region3: #{tpu_custom_call.1} parent=1 // pred_check_branch
      %12 = sbr.rel (0) target = $region5
    $region4: #{tpu_custom_call.1} parent=1 // pred_region
      %s13 = sadd.s32 0, 0
      %s14 = smul.u32 10, %s13
      %s16 = ssub.s32 5120, 5120
      %17 = vsyncadd [#allocation4], %s16
      %s18 = smul.addr %s14, 4
      %s19 = smul.addr %s18, 128
      %s20 = scalar_lea.hbm %s0, %s19
      %s21 = sshll.u32 [#allocation3], 4
      %s22 = int_to_ptr.vmem [resolvable:$true] %s21
      %27 = dma.hbm_to_vmem [thread:$0]  %s20, 5120, %s22, [#allocation4], 512, 512, 32
    $region5: #{tpu_custom_call.1} parent=1 // pred_fallthru
      _
    // Predicated region
    $region6: #{tpu_custom_call.1} parent=1 // pred_check
      _
    $region7: #{tpu_custom_call.1} parent=1 // pred_check_branch
      %29 = sbr.rel (0) target = $region9
    $region8: #{tpu_custom_call.1} parent=1 // pred_region
      %s30 = sadd.s32 0, 0
      %s31 = smul.u32 10, %s30
      %s33 = ssub.s32 5120, 5120
      %34 = vsyncadd [#allocation7], %s33
      %s35 = smul.addr %s31, 4
      %s36 = smul.addr %s35, 128
      %s37 = scalar_lea.hbm %s1, %s36
      %s38 = sshll.u32 [#allocation6], 4
      %s39 = int_to_ptr.vmem [resolvable:$true] %s38
      %44 = dma.hbm_to_vmem [thread:$0]  %s37, 5120, %s39, [#allocation7], 512, 512, 32
    $region9: #{tpu_custom_call.1} parent=1 // pred_fallthru
      _
    // Predicated region
    $region10: #{tpu_custom_call.1} parent=1 // pred_check
      _
    $region11: #{tpu_custom_call.1} parent=1 // pred_check_branch
      %46 = sbr.rel (0) target = $region13
    $region12: #{tpu_custom_call.1} parent=1 // pred_region
      %s47 = sadd.s32 0, 0
      %s48 = smul.u32 10, %s47
      %s50 = ssub.s32 5120, 5120
      %51 = vsyncadd [#allocation7], %s50
      %s52 = smul.addr %s48, 4
      %s53 = smul.addr %s52, 128
      %s54 = scalar_lea.hbm %s2, %s53
      %s55 = sshll.u32 [#allocation8], 4
      %s56 = int_to_ptr.vmem [resolvable:$true] %s55
      %61 = dma.hbm_to_vmem [thread:$0]  %s54, 5120, %s56, [#allocation7], 512, 512, 32
    $region13: #{tpu_custom_call.1} parent=1 // pred_fallthru
      _
    // Predicated region
    $region14: #{tpu_custom_call.1} parent=1 // pred_check
      _
    $region15: #{tpu_custom_call.1} parent=1 // pred_check_branch
      %63 = sbr.rel (0) target = $region17
    $region16: #{tpu_custom_call.1} parent=1 // pred_region
      %64 = dma.done [#allocation4], 5120
    $region17: #{tpu_custom_call.1} parent=1 // pred_fallthru
      _
    // Predicated region
    $region18: #{tpu_custom_call.1} parent=1 // pred_check
      _
    $region19: #{tpu_custom_call.1} parent=1 // pred_check_branch
      %66 = sbr.rel (0) target = $region21
    $region20: #{tpu_custom_call.1} parent=1 // pred_region
      %67 = dma.done [#allocation7], 5120
    $region21: #{tpu_custom_call.1} parent=1 // pred_fallthru
      _
    // Predicated region
    $region22: #{tpu_custom_call.1} parent=1 // pred_check
      _
    $region23: #{tpu_custom_call.1} parent=1 // pred_check_branch
      %69 = sbr.rel (0) target = $region25
    $region24: #{tpu_custom_call.1} parent=1 // pred_region
      %70 = dma.done [#allocation7], 5120
    $region25: #{tpu_custom_call.1} parent=1 // pred_fallthru
      _
    %s71 = sadd.s32 0, 0
    %s72 = smul.u32 10, %s71
    %s73 = sadd.s32 0, 0
    %s74 = smul.u32 10, %s73
    %s75 = sadd.s32 0, 0
    %s76 = smul.u32 10, %s75
    %p77 = scmp.eq.s32.totalorder 0, 0
    // Predicated region
    $region26: #{tpu_custom_call.1} parent=1 // pred_check
      %p78 = pneg %p77
    $region27: #{tpu_custom_call.1} parent=1 // pred_check_branch
      %80 = sbr.rel (%p78) target = $region29
    $region28: #{tpu_custom_call.1} parent=1 // pred_region
      %81 = vst [vmem:[#allocation2] sm:$0xff] 0.0
      %82 = vst [vmem:[#allocation2 + $0x8] sm:$0xff] 0.0
      %83 = vst [vmem:[#allocation2 + $0x10] sm:$0xff] 0.0
      %84 = vst [vmem:[#allocation2 + $0x18] sm:$0xff] 0.0
      %85 = vst [vmem:[#allocation2 + $0x20] sm:$0xff] 0.0
      %86 = vst [vmem:[#allocation2 + $0x28] sm:$0xff] 0.0
      %87 = vst [vmem:[#allocation2 + $0x30] sm:$0xff] 0.0
      %88 = vst [vmem:[#allocation2 + $0x38] sm:$0xff] 0.0
      %89 = vst [vmem:[#allocation2 + $0x40] sm:$0xff] 0.0
      %90 = vst [vmem:[#allocation2 + $0x48] sm:$0xff] 0.0
      %91 = vst [vmem:[#allocation2 + $0x50] sm:$0xff] 0.0
      %92 = vst [vmem:[#allocation2 + $0x58] sm:$0xff] 0.0
      %93 = vst [vmem:[#allocation2 + $0x60] sm:$0xff] 0.0
      %94 = vst [vmem:[#allocation2 + $0x68] sm:$0xff] 0.0
      %95 = vst [vmem:[#allocation2 + $0x70] sm:$0xff] 0.0
      %96 = vst [vmem:[#allocation2 + $0x78] sm:$0xff] 0.0
      %97 = vst [vmem:[#allocation2 + $0x80] sm:$0xff] 0.0
      %98 = vst [vmem:[#allocation2 + $0x88] sm:$0xff] 0.0
      %99 = vst [vmem:[#allocation2 + $0x90] sm:$0xff] 0.0
      %100 = vst [vmem:[#allocation2 + $0x98] sm:$0xff] 0.0
      %101 = vst [vmem:[#allocation2 + $0xa0] sm:$0xff] 0.0
      %102 = vst [vmem:[#allocation2 + $0xa8] sm:$0xff] 0.0
      %103 = vst [vmem:[#allocation2 + $0xb0] sm:$0xff] 0.0
      %104 = vst [vmem:[#allocation2 + $0xb8] sm:$0xff] 0.0
      %105 = vst [vmem:[#allocation2 + $0xc0] sm:$0xff] 0.0
      %106 = vst [vmem:[#allocation2 + $0xc8] sm:$0xff] 0.0
      %107 = vst [vmem:[#allocation2 + $0xd0] sm:$0xff] 0.0
      %108 = vst [vmem:[#allocation2 + $0xd8] sm:$0xff] 0.0
      %109 = vst [vmem:[#allocation2 + $0xe0] sm:$0xff] 0.0
      %110 = vst [vmem:[#allocation2 + $0xe8] sm:$0xff] 0.0
      %111 = vst [vmem:[#allocation2 + $0xf0] sm:$0xff] 0.0
      %112 = vst [vmem:[#allocation2 + $0xf8] sm:$0xff] 0.0
      %113 = vst [vmem:[#allocation2 + $0x100] sm:$0xff] 0.0
      %114 = vst [vmem:[#allocation2 + $0x108] sm:$0xff] 0.0
      %115 = vst [vmem:[#allocation2 + $0x110] sm:$0xff] 0.0
      %116 = vst [vmem:[#allocation2 + $0x118] sm:$0xff] 0.0
      %117 = vst [vmem:[#allocation2 + $0x120] sm:$0xff] 0.0
      %118 = vst [vmem:[#allocation2 + $0x128] sm:$0xff] 0.0
      %119 = vst [vmem:[#allocation2 + $0x130] sm:$0xff] 0.0
      %120 = vst [vmem:[#allocation2 + $0x138] sm:$0xff] 0.0
    $region29: #{tpu_custom_call.1} parent=1 // pred_fallthru
      _
    %v121 = vld [vmem:[#allocation3] sm:$0xff]
    %v122 = vld [vmem:[#allocation3 + $0x8] sm:$0xff]
    %v123 = vld [vmem:[#allocation3 + $0x10] sm:$0xff]
    %v124 = vld [vmem:[#allocation3 + $0x18] sm:$0xff]
    %v125 = vld [vmem:[#allocation3 + $0x20] sm:$0xff]
    %v126 = vld [vmem:[#allocation3 + $0x28] sm:$0xff]
    %v127 = vld [vmem:[#allocation3 + $0x30] sm:$0xff]
    %v128 = vld [vmem:[#allocation3 + $0x38] sm:$0xff]
    %v129 = vld [vmem:[#allocation3 + $0x40] sm:$0xff]
    %v130 = vld [vmem:[#allocation3 + $0x48] sm:$0xff]
    %v131 = vld [vmem:[#allocation3 + $0x50] sm:$0xff]
    %v132 = vld [vmem:[#allocation3 + $0x58] sm:$0xff]
    %v133 = vld [vmem:[#allocation3 + $0x60] sm:$0xff]
    %v134 = vld [vmem:[#allocation3 + $0x68] sm:$0xff]
    %v135 = vld [vmem:[#allocation3 + $0x70] sm:$0xff]
    %v136 = vld [vmem:[#allocation3 + $0x78] sm:$0xff]
    %v137 = vld [vmem:[#allocation3 + $0x80] sm:$0xff]
    %v138 = vld [vmem:[#allocation3 + $0x88] sm:$0xff]
    %v139 = vld [vmem:[#allocation3 + $0x90] sm:$0xff]
    %v140 = vld [vmem:[#allocation3 + $0x98] sm:$0xff]
    %v141 = vld [vmem:[#allocation3 + $0xa0] sm:$0xff]
    %v142 = vld [vmem:[#allocation3 + $0xa8] sm:$0xff]
    %v143 = vld [vmem:[#allocation3 + $0xb0] sm:$0xff]
    %v144 = vld [vmem:[#allocation3 + $0xb8] sm:$0xff]
    %v145 = vld [vmem:[#allocation3 + $0xc0] sm:$0xff]
    %v146 = vld [vmem:[#allocation3 + $0xc8] sm:$0xff]
    %v147 = vld [vmem:[#allocation3 + $0xd0] sm:$0xff]
    %v148 = vld [vmem:[#allocation3 + $0xd8] sm:$0xff]
    %v149 = vld [vmem:[#allocation3 + $0xe0] sm:$0xff]
    %v150 = vld [vmem:[#allocation3 + $0xe8] sm:$0xff]
    %v151 = vld [vmem:[#allocation3 + $0xf0] sm:$0xff]
    %v152 = vld [vmem:[#allocation3 + $0xf8] sm:$0xff]
    %v153 = vld [vmem:[#allocation3 + $0x100] sm:$0xff]
    %v154 = vld [vmem:[#allocation3 + $0x108] sm:$0xff]
    %v155 = vld [vmem:[#allocation3 + $0x110] sm:$0xff]
    %v156 = vld [vmem:[#allocation3 + $0x118] sm:$0xff]
    %v157 = vld [vmem:[#allocation3 + $0x120] sm:$0xff]
    %v158 = vld [vmem:[#allocation3 + $0x128] sm:$0xff]
    %v159 = vld [vmem:[#allocation3 + $0x130] sm:$0xff]
    %v160 = vld [vmem:[#allocation3 + $0x138] sm:$0xff]
    %v161 = vld [vmem:[#allocation6] sm:$0xff]
    %v162 = vld [vmem:[#allocation6 + $0x8] sm:$0xff]
    %v163 = vld [vmem:[#allocation6 + $0x10] sm:$0xff]
    %v164 = vld [vmem:[#allocation6 + $0x18] sm:$0xff]
    %v165 = vld [vmem:[#allocation6 + $0x20] sm:$0xff]
    %v166 = vld [vmem:[#allocation6 + $0x28] sm:$0xff]
    %v167 = vld [vmem:[#allocation6 + $0x30] sm:$0xff]
    %v168 = vld [vmem:[#allocation6 + $0x38] sm:$0xff]
    %v169 = vld [vmem:[#allocation6 + $0x40] sm:$0xff]
    %v170 = vld [vmem:[#allocation6 + $0x48] sm:$0xff]
    %v171 = vld [vmem:[#allocation6 + $0x50] sm:$0xff]
    %v172 = vld [vmem:[#allocation6 + $0x58] sm:$0xff]
    %v173 = vld [vmem:[#allocation6 + $0x60] sm:$0xff]
    %v174 = vld [vmem:[#allocation6 + $0x68] sm:$0xff]
    %v175 = vld [vmem:[#allocation6 + $0x70] sm:$0xff]
    %v176 = vld [vmem:[#allocation6 + $0x78] sm:$0xff]
    %v177 = vld [vmem:[#allocation6 + $0x80] sm:$0xff]
    %v178 = vld [vmem:[#allocation6 + $0x88] sm:$0xff]
    %v179 = vld [vmem:[#allocation6 + $0x90] sm:$0xff]
    %v180 = vld [vmem:[#allocation6 + $0x98] sm:$0xff]
    %v181 = vld [vmem:[#allocation6 + $0xa0] sm:$0xff]
    %v182 = vld [vmem:[#allocation6 + $0xa8] sm:$0xff]
    %v183 = vld [vmem:[#allocation6 + $0xb0] sm:$0xff]
    %v184 = vld [vmem:[#allocation6 + $0xb8] sm:$0xff]
    %v185 = vld [vmem:[#allocation6 + $0xc0] sm:$0xff]
    %v186 = vld [vmem:[#allocation6 + $0xc8] sm:$0xff]
    %v187 = vld [vmem:[#allocation6 + $0xd0] sm:$0xff]
    %v188 = vld [vmem:[#allocation6 + $0xd8] sm:$0xff]
    %v189 = vld [vmem:[#allocation6 + $0xe0] sm:$0xff]
    %v190 = vld [vmem:[#allocation6 + $0xe8] sm:$0xff]
    %v191 = vld [vmem:[#allocation6 + $0xf0] sm:$0xff]
    %v192 = vld [vmem:[#allocation6 + $0xf8] sm:$0xff]
    %v193 = vld [vmem:[#allocation6 + $0x100] sm:$0xff]
    %v194 = vld [vmem:[#allocation6 + $0x108] sm:$0xff]
    %v195 = vld [vmem:[#allocation6 + $0x110] sm:$0xff]
    %v196 = vld [vmem:[#allocation6 + $0x118] sm:$0xff]
    %v197 = vld [vmem:[#allocation6 + $0x120] sm:$0xff]
    %v198 = vld [vmem:[#allocation6 + $0x128] sm:$0xff]
    %v199 = vld [vmem:[#allocation6 + $0x130] sm:$0xff]
    %v200 = vld [vmem:[#allocation6 + $0x138] sm:$0xff]
    %v201 = vld [vmem:[#allocation8] sm:$0xff]
    %v202 = vld [vmem:[#allocation8 + $0x8] sm:$0xff]
    %v203 = vld [vmem:[#allocation8 + $0x10] sm:$0xff]
    %v204 = vld [vmem:[#allocation8 + $0x18] sm:$0xff]
    %v205 = vld [vmem:[#allocation8 + $0x20] sm:$0xff]
    %v206 = vld [vmem:[#allocation8 + $0x28] sm:$0xff]
    %v207 = vld [vmem:[#allocation8 + $0x30] sm:$0xff]
    %v208 = vld [vmem:[#allocation8 + $0x38] sm:$0xff]
    %v209 = vld [vmem:[#allocation8 + $0x40] sm:$0xff]
    %v210 = vld [vmem:[#allocation8 + $0x48] sm:$0xff]
    %v211 = vld [vmem:[#allocation8 + $0x50] sm:$0xff]
    %v212 = vld [vmem:[#allocation8 + $0x58] sm:$0xff]
    %v213 = vld [vmem:[#allocation8 + $0x60] sm:$0xff]
    %v214 = vld [vmem:[#allocation8 + $0x68] sm:$0xff]
    %v215 = vld [vmem:[#allocation8 + $0x70] sm:$0xff]
    %v216 = vld [vmem:[#allocation8 + $0x78] sm:$0xff]
    %v217 = vld [vmem:[#allocation8 + $0x80] sm:$0xff]
    %v218 = vld [vmem:[#allocation8 + $0x88] sm:$0xff]
    %v219 = vld [vmem:[#allocation8 + $0x90] sm:$0xff]
    %v220 = vld [vmem:[#allocation8 + $0x98] sm:$0xff]
    %v221 = vld [vmem:[#allocation8 + $0xa0] sm:$0xff]
    %v222 = vld [vmem:[#allocation8 + $0xa8] sm:$0xff]
    %v223 = vld [vmem:[#allocation8 + $0xb0] sm:$0xff]
    %v224 = vld [vmem:[#allocation8 + $0xb8] sm:$0xff]
    %v225 = vld [vmem:[#allocation8 + $0xc0] sm:$0xff]
    %v226 = vld [vmem:[#allocation8 + $0xc8] sm:$0xff]
    %v227 = vld [vmem:[#allocation8 + $0xd0] sm:$0xff]
    %v228 = vld [vmem:[#allocation8 + $0xd8] sm:$0xff]
    %v229 = vld [vmem:[#allocation8 + $0xe0] sm:$0xff]
    %v230 = vld [vmem:[#allocation8 + $0xe8] sm:$0xff]
    %v231 = vld [vmem:[#allocation8 + $0xf0] sm:$0xff]
    %v232 = vld [vmem:[#allocation8 + $0xf8] sm:$0xff]
    %v233 = vld [vmem:[#allocation8 + $0x100] sm:$0xff]
    %v234 = vld [vmem:[#allocation8 + $0x108] sm:$0xff]
    %v235 = vld [vmem:[#allocation8 + $0x110] sm:$0xff]
    %v236 = vld [vmem:[#allocation8 + $0x118] sm:$0xff]
    %v237 = vld [vmem:[#allocation8 + $0x120] sm:$0xff]
    %v238 = vld [vmem:[#allocation8 + $0x128] sm:$0xff]
    %v239 = vld [vmem:[#allocation8 + $0x130] sm:$0xff]
    %v240 = vld [vmem:[#allocation8 + $0x138] sm:$0xff]
    %v241 = vand.u32 2147483647, %v121
    %v242 = vand.u32 2147483647, %v122
    %v243 = vand.u32 2147483647, %v123
    %v244 = vand.u32 2147483647, %v124
    %v245 = vand.u32 2147483647, %v125
    %v246 = vand.u32 2147483647, %v126
    %v247 = vand.u32 2147483647, %v127
    %v248 = vand.u32 2147483647, %v128
    %v249 = vand.u32 2147483647, %v129
    %v250 = vand.u32 2147483647, %v130
    %v251 = vand.u32 2147483647, %v131
    %v252 = vand.u32 2147483647, %v132
    %v253 = vand.u32 2147483647, %v133
    %v254 = vand.u32 2147483647, %v134
    %v255 = vand.u32 2147483647, %v135
    %v256 = vand.u32 2147483647, %v136
    %v257 = vand.u32 2147483647, %v137
    %v258 = vand.u32 2147483647, %v138
    %v259 = vand.u32 2147483647, %v139
    %v260 = vand.u32 2147483647, %v140
    %v261 = vand.u32 2147483647, %v141
    %v262 = vand.u32 2147483647, %v142
    %v263 = vand.u32 2147483647, %v143
    %v264 = vand.u32 2147483647, %v144
    %v265 = vand.u32 2147483647, %v145
    %v266 = vand.u32 2147483647, %v146
    %v267 = vand.u32 2147483647, %v147
    %v268 = vand.u32 2147483647, %v148
    %v269 = vand.u32 2147483647, %v149
    %v270 = vand.u32 2147483647, %v150
    %v271 = vand.u32 2147483647, %v151
    %v272 = vand.u32 2147483647, %v152
    %v273 = vand.u32 2147483647, %v153
    %v274 = vand.u32 2147483647, %v154
    %v275 = vand.u32 2147483647, %v155
    %v276 = vand.u32 2147483647, %v156
    %v277 = vand.u32 2147483647, %v157
    %v278 = vand.u32 2147483647, %v158
    %v279 = vand.u32 2147483647, %v159
    %v280 = vand.u32 2147483647, %v160
    %v281 = vsub.f32 0.0, %v241
    %v282 = vsub.f32 0.0, %v242
    %v283 = vsub.f32 0.0, %v243
    %v284 = vsub.f32 0.0, %v244
    %v285 = vsub.f32 0.0, %v245
    %v286 = vsub.f32 0.0, %v246
    %v287 = vsub.f32 0.0, %v247
    %v288 = vsub.f32 0.0, %v248
    %v289 = vsub.f32 0.0, %v249
    %v290 = vsub.f32 0.0, %v250
    %v291 = vsub.f32 0.0, %v251
    %v292 = vsub.f32 0.0, %v252
    %v293 = vsub.f32 0.0, %v253
    %v294 = vsub.f32 0.0, %v254
    %v295 = vsub.f32 0.0, %v255
    %v296 = vsub.f32 0.0, %v256
    %v297 = vsub.f32 0.0, %v257
    %v298 = vsub.f32 0.0, %v258
    %v299 = vsub.f32 0.0, %v259
    %v300 = vsub.f32 0.0, %v260
    %v301 = vsub.f32 0.0, %v261
    %v302 = vsub.f32 0.0, %v262
    %v303 = vsub.f32 0.0, %v263
    %v304 = vsub.f32 0.0, %v264
    %v305 = vsub.f32 0.0, %v265
    %v306 = vsub.f32 0.0, %v266
    %v307 = vsub.f32 0.0, %v267
    %v308 = vsub.f32 0.0, %v268
    %v309 = vsub.f32 0.0, %v269
    %v310 = vsub.f32 0.0, %v270
    %v311 = vsub.f32 0.0, %v271
    %v312 = vsub.f32 0.0, %v272
    %v313 = vsub.f32 0.0, %v273
    %v314 = vsub.f32 0.0, %v274
    %v315 = vsub.f32 0.0, %v275
    %v316 = vsub.f32 0.0, %v276
    %v317 = vsub.f32 0.0, %v277
    %v318 = vsub.f32 0.0, %v278
    %v319 = vsub.f32 0.0, %v279
    %v320 = vsub.f32 0.0, %v280
    %v321 = vmul.f32 %v281, 1.442695
    %v322 = vpow.pop %v321
    %v323 = vmul.f32 %v282, 1.442695
    %v324 = vpow.pop %v323
    %v325 = vmul.f32 %v283, 1.442695
    %v326 = vpow.pop %v325
    %v327 = vmul.f32 %v284, 1.442695
    %v328 = vpow.pop %v327
    %v329 = vmul.f32 %v285, 1.442695
    %v330 = vpow.pop %v329
    %v331 = vmul.f32 %v286, 1.442695
    %v332 = vpow.pop %v331
    %v333 = vmul.f32 %v287, 1.442695
    %v334 = vpow.pop %v333
    %v335 = vmul.f32 %v288, 1.442695
    %v336 = vpow.pop %v335
    %v337 = vmul.f32 %v289, 1.442695
    %v338 = vpow.pop %v337
    %v339 = vmul.f32 %v290, 1.442695
    %v340 = vpow.pop %v339
    %v341 = vmul.f32 %v291, 1.442695
    %v342 = vpow.pop %v341
    %v343 = vmul.f32 %v292, 1.442695
    %v344 = vpow.pop %v343
    %v345 = vmul.f32 %v293, 1.442695
    %v346 = vpow.pop %v345
    %v347 = vmul.f32 %v294, 1.442695
    %v348 = vpow.pop %v347
    %v349 = vmul.f32 %v295, 1.442695
    %v350 = vpow.pop %v349
    %v351 = vmul.f32 %v296, 1.442695
    %v352 = vpow.pop %v351
    %v353 = vmul.f32 %v297, 1.442695
    %v354 = vpow.pop %v353
    %v355 = vmul.f32 %v298, 1.442695
    %v356 = vpow.pop %v355
    %v357 = vmul.f32 %v299, 1.442695
    %v358 = vpow.pop %v357
    %v359 = vmul.f32 %v300, 1.442695
    %v360 = vpow.pop %v359
    %v361 = vmul.f32 %v301, 1.442695
    %v362 = vpow.pop %v361
    %v363 = vmul.f32 %v302, 1.442695
    %v364 = vpow.pop %v363
    %v365 = vmul.f32 %v303, 1.442695
    %v366 = vpow.pop %v365
    %v367 = vmul.f32 %v304, 1.442695
    %v368 = vpow.pop %v367
    %v369 = vmul.f32 %v305, 1.442695
    %v370 = vpow.pop %v369
    %v371 = vmul.f32 %v306, 1.442695
    %v372 = vpow.pop %v371
    %v373 = vmul.f32 %v307, 1.442695
    %v374 = vpow.pop %v373
    %v375 = vmul.f32 %v308, 1.442695
    %v376 = vpow.pop %v375
    %v377 = vmul.f32 %v309, 1.442695
    %v378 = vpow.pop %v377
    %v379 = vmul.f32 %v310, 1.442695
    %v380 = vpow.pop %v379
    %v381 = vmul.f32 %v311, 1.442695
    %v382 = vpow.pop %v381
    %v383 = vmul.f32 %v312, 1.442695
    %v384 = vpow.pop %v383
    %v385 = vmul.f32 %v313, 1.442695
    %v386 = vpow.pop %v385
    %v387 = vmul.f32 %v314, 1.442695
    %v388 = vpow.pop %v387
    %v389 = vmul.f32 %v315, 1.442695
    %v390 = vpow.pop %v389
    %v391 = vmul.f32 %v316, 1.442695
    %v392 = vpow.pop %v391
    %v393 = vmul.f32 %v317, 1.442695
    %v394 = vpow.pop %v393
    %v395 = vmul.f32 %v318, 1.442695
    %v396 = vpow.pop %v395
    %v397 = vmul.f32 %v319, 1.442695
    %v398 = vpow.pop %v397
    %v399 = vmul.f32 %v320, 1.442695
    %v400 = vpow.pop %v399
    %v401 = vadd.f32 %v322, 1.0
    %v402 = vadd.f32 %v324, 1.0
    %v403 = vadd.f32 %v326, 1.0
    %v404 = vadd.f32 %v328, 1.0
    %v405 = vadd.f32 %v330, 1.0
    %v406 = vadd.f32 %v332, 1.0
    %v407 = vadd.f32 %v334, 1.0
    %v408 = vadd.f32 %v336, 1.0
    %v409 = vadd.f32 %v338, 1.0
    %v410 = vadd.f32 %v340, 1.0
    %v411 = vadd.f32 %v342, 1.0
    %v412 = vadd.f32 %v344, 1.0
    %v413 = vadd.f32 %v346, 1.0
    %v414 = vadd.f32 %v348, 1.0
    %v415 = vadd.f32 %v350, 1.0
    %v416 = vadd.f32 %v352, 1.0
    %v417 = vadd.f32 %v354, 1.0
    %v418 = vadd.f32 %v356, 1.0
    %v419 = vadd.f32 %v358, 1.0
    %v420 = vadd.f32 %v360, 1.0
    %v421 = vadd.f32 %v362, 1.0
    %v422 = vadd.f32 %v364, 1.0
    %v423 = vadd.f32 %v366, 1.0
    %v424 = vadd.f32 %v368, 1.0
    %v425 = vadd.f32 %v370, 1.0
    %v426 = vadd.f32 %v372, 1.0
    %v427 = vadd.f32 %v374, 1.0
    %v428 = vadd.f32 %v376, 1.0
    %v429 = vadd.f32 %v378, 1.0
    %v430 = vadd.f32 %v380, 1.0
    %v431 = vadd.f32 %v382, 1.0
    %v432 = vadd.f32 %v384, 1.0
    %v433 = vadd.f32 %v386, 1.0
    %v434 = vadd.f32 %v388, 1.0
    %v435 = vadd.f32 %v390, 1.0
    %v436 = vadd.f32 %v392, 1.0
    %v437 = vadd.f32 %v394, 1.0
    %v438 = vadd.f32 %v396, 1.0
    %v439 = vadd.f32 %v398, 1.0
    %v440 = vadd.f32 %v400, 1.0
    %v441 = vrcp.pop %v401
    %v442 = vmul.f32 1.0, %v441
    %v443 = vrcp.pop %v402
    %v444 = vmul.f32 1.0, %v443
    %v445 = vrcp.pop %v403
    %v446 = vmul.f32 1.0, %v445
    %v447 = vrcp.pop %v404
    %v448 = vmul.f32 1.0, %v447
    %v449 = vrcp.pop %v405
    %v450 = vmul.f32 1.0, %v449
    %v451 = vrcp.pop %v406
    %v452 = vmul.f32 1.0, %v451
    %v453 = vrcp.pop %v407
    %v454 = vmul.f32 1.0, %v453
    %v455 = vrcp.pop %v408
    %v456 = vmul.f32 1.0, %v455
    %v457 = vrcp.pop %v409
    %v458 = vmul.f32 1.0, %v457
    %v459 = vrcp.pop %v410
    %v460 = vmul.f32 1.0, %v459
    %v461 = vrcp.pop %v411
    %v462 = vmul.f32 1.0, %v461
    %v463 = vrcp.pop %v412
    %v464 = vmul.f32 1.0, %v463
    %v465 = vrcp.pop %v413
    %v466 = vmul.f32 1.0, %v465
    %v467 = vrcp.pop %v414
    %v468 = vmul.f32 1.0, %v467
    %v469 = vrcp.pop %v415
    %v470 = vmul.f32 1.0, %v469
    %v471 = vrcp.pop %v416
    %v472 = vmul.f32 1.0, %v471
    %v473 = vrcp.pop %v417
    %v474 = vmul.f32 1.0, %v473
    %v475 = vrcp.pop %v418
    %v476 = vmul.f32 1.0, %v475
    %v477 = vrcp.pop %v419
    %v478 = vmul.f32 1.0, %v477
    %v479 = vrcp.pop %v420
    %v480 = vmul.f32 1.0, %v479
    %v481 = vrcp.pop %v421
    %v482 = vmul.f32 1.0, %v481
    %v483 = vrcp.pop %v422
    %v484 = vmul.f32 1.0, %v483
    %v485 = vrcp.pop %v423
    %v486 = vmul.f32 1.0, %v485
    %v487 = vrcp.pop %v424
    %v488 = vmul.f32 1.0, %v487
    %v489 = vrcp.pop %v425
    %v490 = vmul.f32 1.0, %v489
    %v491 = vrcp.pop %v426
    %v492 = vmul.f32 1.0, %v491
    %v493 = vrcp.pop %v427
    %v494 = vmul.f32 1.0, %v493
    %v495 = vrcp.pop %v428
    %v496 = vmul.f32 1.0, %v495
    %v497 = vrcp.pop %v429
    %v498 = vmul.f32 1.0, %v497
    %v499 = vrcp.pop %v430
    %v500 = vmul.f32 1.0, %v499
    %v501 = vrcp.pop %v431
    %v502 = vmul.f32 1.0, %v501
    %v503 = vrcp.pop %v432
    %v504 = vmul.f32 1.0, %v503
    %v505 = vrcp.pop %v433
    %v506 = vmul.f32 1.0, %v505
    %v507 = vrcp.pop %v434
    %v508 = vmul.f32 1.0, %v507
    %v509 = vrcp.pop %v435
    %v510 = vmul.f32 1.0, %v509
    %v511 = vrcp.pop %v436
    %v512 = vmul.f32 1.0, %v511
    %v513 = vrcp.pop %v437
    %v514 = vmul.f32 1.0, %v513
    %v515 = vrcp.pop %v438
    %v516 = vmul.f32 1.0, %v515
    %v517 = vrcp.pop %v439
    %v518 = vmul.f32 1.0, %v517
    %v519 = vrcp.pop %v440
    %v520 = vmul.f32 1.0, %v519
    %vm521 = vcmp.ge.f32.partialorder %v121, 0.0
    %vm522 = vcmp.ge.f32.partialorder %v122, 0.0
    %vm523 = vcmp.ge.f32.partialorder %v123, 0.0
    %vm524 = vcmp.ge.f32.partialorder %v124, 0.0
    %vm525 = vcmp.ge.f32.partialorder %v125, 0.0
    %vm526 = vcmp.ge.f32.partialorder %v126, 0.0
    %vm527 = vcmp.ge.f32.partialorder %v127, 0.0
    %vm528 = vcmp.ge.f32.partialorder %v128, 0.0
    %vm529 = vcmp.ge.f32.partialorder %v129, 0.0
    %vm530 = vcmp.ge.f32.partialorder %v130, 0.0
    %vm531 = vcmp.ge.f32.partialorder %v131, 0.0
    %vm532 = vcmp.ge.f32.partialorder %v132, 0.0
    %vm533 = vcmp.ge.f32.partialorder %v133, 0.0
    %vm534 = vcmp.ge.f32.partialorder %v134, 0.0
    %vm535 = vcmp.ge.f32.partialorder %v135, 0.0
    %vm536 = vcmp.ge.f32.partialorder %v136, 0.0
    %vm537 = vcmp.ge.f32.partialorder %v137, 0.0
    %vm538 = vcmp.ge.f32.partialorder %v138, 0.0
    %vm539 = vcmp.ge.f32.partialorder %v139, 0.0
    %vm540 = vcmp.ge.f32.partialorder %v140, 0.0
    %vm541 = vcmp.ge.f32.partialorder %v141, 0.0
    %vm542 = vcmp.ge.f32.partialorder %v142, 0.0
    %vm543 = vcmp.ge.f32.partialorder %v143, 0.0
    %vm544 = vcmp.ge.f32.partialorder %v144, 0.0
    %vm545 = vcmp.ge.f32.partialorder %v145, 0.0
    %vm546 = vcmp.ge.f32.partialorder %v146, 0.0
    %vm547 = vcmp.ge.f32.partialorder %v147, 0.0
    %vm548 = vcmp.ge.f32.partialorder %v148, 0.0
    %vm549 = vcmp.ge.f32.partialorder %v149, 0.0
    %vm550 = vcmp.ge.f32.partialorder %v150, 0.0
    %vm551 = vcmp.ge.f32.partialorder %v151, 0.0
    %vm552 = vcmp.ge.f32.partialorder %v152, 0.0
    %vm553 = vcmp.ge.f32.partialorder %v153, 0.0
    %vm554 = vcmp.ge.f32.partialorder %v154, 0.0
    %vm555 = vcmp.ge.f32.partialorder %v155, 0.0
    %vm556 = vcmp.ge.f32.partialorder %v156, 0.0
    %vm557 = vcmp.ge.f32.partialorder %v157, 0.0
    %vm558 = vcmp.ge.f32.partialorder %v158, 0.0
    %vm559 = vcmp.ge.f32.partialorder %v159, 0.0
    %vm560 = vcmp.ge.f32.partialorder %v160, 0.0
    %v561 = vmul.f32 %v322, %v442
    %v562 = vmul.f32 %v324, %v444
    %v563 = vmul.f32 %v326, %v446
    %v564 = vmul.f32 %v328, %v448
    %v565 = vmul.f32 %v330, %v450
    %v566 = vmul.f32 %v332, %v452
    %v567 = vmul.f32 %v334, %v454
    %v568 = vmul.f32 %v336, %v456
    %v569 = vmul.f32 %v338, %v458
    %v570 = vmul.f32 %v340, %v460
    %v571 = vmul.f32 %v342, %v462
    %v572 = vmul.f32 %v344, %v464
    %v573 = vmul.f32 %v346, %v466
    %v574 = vmul.f32 %v348, %v468
    %v575 = vmul.f32 %v350, %v470
    %v576 = vmul.f32 %v352, %v472
    %v577 = vmul.f32 %v354, %v474
    %v578 = vmul.f32 %v356, %v476
    %v579 = vmul.f32 %v358, %v478
    %v580 = vmul.f32 %v360, %v480
    %v581 = vmul.f32 %v362, %v482
    %v582 = vmul.f32 %v364, %v484
    %v583 = vmul.f32 %v366, %v486
    %v584 = vmul.f32 %v368, %v488
    %v585 = vmul.f32 %v370, %v490
    %v586 = vmul.f32 %v372, %v492
    %v587 = vmul.f32 %v374, %v494
    %v588 = vmul.f32 %v376, %v496
    %v589 = vmul.f32 %v378, %v498
    %v590 = vmul.f32 %v380, %v500
    %v591 = vmul.f32 %v382, %v502
    %v592 = vmul.f32 %v384, %v504
    %v593 = vmul.f32 %v386, %v506
    %v594 = vmul.f32 %v388, %v508
    %v595 = vmul.f32 %v390, %v510
    %v596 = vmul.f32 %v392, %v512
    %v597 = vmul.f32 %v394, %v514
    %v598 = vmul.f32 %v396, %v516
    %v599 = vmul.f32 %v398, %v518
    %v600 = vmul.f32 %v400, %v520
    %v601 = vsel %vm521, %v442, %v561
    %v602 = vsel %vm522, %v444, %v562
    %v603 = vsel %vm523, %v446, %v563
    %v604 = vsel %vm524, %v448, %v564
    %v605 = vsel %vm525, %v450, %v565
    %v606 = vsel %vm526, %v452, %v566
    %v607 = vsel %vm527, %v454, %v567
    %v608 = vsel %vm528, %v456, %v568
    %v609 = vsel %vm529, %v458, %v569
    %v610 = vsel %vm530, %v460, %v570
    %v611 = vsel %vm531, %v462, %v571
    %v612 = vsel %vm532, %v464, %v572
    %v613 = vsel %vm533, %v466, %v573
    %v614 = vsel %vm534, %v468, %v574
    %v615 = vsel %vm535, %v470, %v575
    %v616 = vsel %vm536, %v472, %v576
    %v617 = vsel %vm537, %v474, %v577
    %v618 = vsel %vm538, %v476, %v578
    %v619 = vsel %vm539, %v478, %v579
    %v620 = vsel %vm540, %v480, %v580
    %v621 = vsel %vm541, %v482, %v581
    %v622 = vsel %vm542, %v484, %v582
    %v623 = vsel %vm543, %v486, %v583
    %v624 = vsel %vm544, %v488, %v584
    %v625 = vsel %vm545, %v490, %v585
    %v626 = vsel %vm546, %v492, %v586
    %v627 = vsel %vm547, %v494, %v587
    %v628 = vsel %vm548, %v496, %v588
    %v629 = vsel %vm549, %v498, %v589
    %v630 = vsel %vm550, %v500, %v590
    %v631 = vsel %vm551, %v502, %v591
    %v632 = vsel %vm552, %v504, %v592
    %v633 = vsel %vm553, %v506, %v593
    %v634 = vsel %vm554, %v508, %v594
    %v635 = vsel %vm555, %v510, %v595
    %v636 = vsel %vm556, %v512, %v596
    %v637 = vsel %vm557, %v514, %v597
    %v638 = vsel %vm558, %v516, %v598
    %v639 = vsel %vm559, %v518, %v599
    %v640 = vsel %vm560, %v520, %v600
    %v641 = vmul.f32 %v601, %v601
    %v642 = vmul.f32 %v602, %v602
    %v643 = vmul.f32 %v603, %v603
    %v644 = vmul.f32 %v604, %v604
    %v645 = vmul.f32 %v605, %v605
    %v646 = vmul.f32 %v606, %v606
    %v647 = vmul.f32 %v607, %v607
    %v648 = vmul.f32 %v608, %v608
    %v649 = vmul.f32 %v609, %v609
    %v650 = vmul.f32 %v610, %v610
    %v651 = vmul.f32 %v611, %v611
    %v652 = vmul.f32 %v612, %v612
    %v653 = vmul.f32 %v613, %v613
    %v654 = vmul.f32 %v614, %v614
    %v655 = vmul.f32 %v615, %v615
    %v656 = vmul.f32 %v616, %v616
    %v657 = vmul.f32 %v617, %v617
    %v658 = vmul.f32 %v618, %v618
    %v659 = vmul.f32 %v619, %v619
    %v660 = vmul.f32 %v620, %v620
    %v661 = vmul.f32 %v621, %v621
    %v662 = vmul.f32 %v622, %v622
    %v663 = vmul.f32 %v623, %v623
    %v664 = vmul.f32 %v624, %v624
    %v665 = vmul.f32 %v625, %v625
    %v666 = vmul.f32 %v626, %v626
    %v667 = vmul.f32 %v627, %v627
    %v668 = vmul.f32 %v628, %v628
    %v669 = vmul.f32 %v629, %v629
    %v670 = vmul.f32 %v630, %v630
    %v671 = vmul.f32 %v631, %v631
    %v672 = vmul.f32 %v632, %v632
    %v673 = vmul.f32 %v633, %v633
    %v674 = vmul.f32 %v634, %v634
    %v675 = vmul.f32 %v635, %v635
    %v676 = vmul.f32 %v636, %v636
    %v677 = vmul.f32 %v637, %v637
    %v678 = vmul.f32 %v638, %v638
    %v679 = vmul.f32 %v639, %v639
    %v680 = vmul.f32 %v640, %v640
    %v681 = vmul.f32 %v641, 0.75
    %v682 = vmul.f32 %v642, 0.75
    %v683 = vmul.f32 %v643, 0.75
    %v684 = vmul.f32 %v644, 0.75
    %v685 = vmul.f32 %v645, 0.75
    %v686 = vmul.f32 %v646, 0.75
    %v687 = vmul.f32 %v647, 0.75
    %v688 = vmul.f32 %v648, 0.75
    %v689 = vmul.f32 %v649, 0.75
    %v690 = vmul.f32 %v650, 0.75
    %v691 = vmul.f32 %v651, 0.75
    %v692 = vmul.f32 %v652, 0.75
    %v693 = vmul.f32 %v653, 0.75
    %v694 = vmul.f32 %v654, 0.75
    %v695 = vmul.f32 %v655, 0.75
    %v696 = vmul.f32 %v656, 0.75
    %v697 = vmul.f32 %v657, 0.75
    %v698 = vmul.f32 %v658, 0.75
    %v699 = vmul.f32 %v659, 0.75
    %v700 = vmul.f32 %v660, 0.75
    %v701 = vmul.f32 %v661, 0.75
    %v702 = vmul.f32 %v662, 0.75
    %v703 = vmul.f32 %v663, 0.75
    %v704 = vmul.f32 %v664, 0.75
    %v705 = vmul.f32 %v665, 0.75
    %v706 = vmul.f32 %v666, 0.75
    %v707 = vmul.f32 %v667, 0.75
    %v708 = vmul.f32 %v668, 0.75
    %v709 = vmul.f32 %v669, 0.75
    %v710 = vmul.f32 %v670, 0.75
    %v711 = vmul.f32 %v671, 0.75
    %v712 = vmul.f32 %v672, 0.75
    %v713 = vmul.f32 %v673, 0.75
    %v714 = vmul.f32 %v674, 0.75
    %v715 = vmul.f32 %v675, 0.75
    %v716 = vmul.f32 %v676, 0.75
    %v717 = vmul.f32 %v677, 0.75
    %v718 = vmul.f32 %v678, 0.75
    %v719 = vmul.f32 %v679, 0.75
    %v720 = vmul.f32 %v680, 0.75
    %v721 = vsub.f32 1.0, %v201
    %v722 = vsub.f32 1.0, %v202
    %v723 = vsub.f32 1.0, %v203
    %v724 = vsub.f32 1.0, %v204
    %v725 = vsub.f32 1.0, %v205
    %v726 = vsub.f32 1.0, %v206
    %v727 = vsub.f32 1.0, %v207
    %v728 = vsub.f32 1.0, %v208
    %v729 = vsub.f32 1.0, %v209
    %v730 = vsub.f32 1.0, %v210
    %v731 = vsub.f32 1.0, %v211
    %v732 = vsub.f32 1.0, %v212
    %v733 = vsub.f32 1.0, %v213
    %v734 = vsub.f32 1.0, %v214
    %v735 = vsub.f32 1.0, %v215
    %v736 = vsub.f32 1.0, %v216
    %v737 = vsub.f32 1.0, %v217
    %v738 = vsub.f32 1.0, %v218
    %v739 = vsub.f32 1.0, %v219
    %v740 = vsub.f32 1.0, %v220
    %v741 = vsub.f32 1.0, %v221
    %v742 = vsub.f32 1.0, %v222
    %v743 = vsub.f32 1.0, %v223
    %v744 = vsub.f32 1.0, %v224
    %v745 = vsub.f32 1.0, %v225
    %v746 = vsub.f32 1.0, %v226
    %v747 = vsub.f32 1.0, %v227
    %v748 = vsub.f32 1.0, %v228
    %v749 = vsub.f32 1.0, %v229
    %v750 = vsub.f32 1.0, %v230
    %v751 = vsub.f32 1.0, %v231
    %v752 = vsub.f32 1.0, %v232
    %v753 = vsub.f32 1.0, %v233
    %v754 = vsub.f32 1.0, %v234
    %v755 = vsub.f32 1.0, %v235
    %v756 = vsub.f32 1.0, %v236
    %v757 = vsub.f32 1.0, %v237
    %v758 = vsub.f32 1.0, %v238
    %v759 = vsub.f32 1.0, %v239
    %v760 = vsub.f32 1.0, %v240
    %v761 = vmul.f32 %v681, %v721
    %v762 = vmul.f32 %v682, %v722
    %v763 = vmul.f32 %v683, %v723
    %v764 = vmul.f32 %v684, %v724
    %v765 = vmul.f32 %v685, %v725
    %v766 = vmul.f32 %v686, %v726
    %v767 = vmul.f32 %v687, %v727
    %v768 = vmul.f32 %v688, %v728
    %v769 = vmul.f32 %v689, %v729
    %v770 = vmul.f32 %v690, %v730
    %v771 = vmul.f32 %v691, %v731
    %v772 = vmul.f32 %v692, %v732
    %v773 = vmul.f32 %v693, %v733
    %v774 = vmul.f32 %v694, %v734
    %v775 = vmul.f32 %v695, %v735
    %v776 = vmul.f32 %v696, %v736
    %v777 = vmul.f32 %v697, %v737
    %v778 = vmul.f32 %v698, %v738
    %v779 = vmul.f32 %v699, %v739
    %v780 = vmul.f32 %v700, %v740
    %v781 = vmul.f32 %v701, %v741
    %v782 = vmul.f32 %v702, %v742
    %v783 = vmul.f32 %v703, %v743
    %v784 = vmul.f32 %v704, %v744
    %v785 = vmul.f32 %v705, %v745
    %v786 = vmul.f32 %v706, %v746
    %v787 = vmul.f32 %v707, %v747
    %v788 = vmul.f32 %v708, %v748
    %v789 = vmul.f32 %v709, %v749
    %v790 = vmul.f32 %v710, %v750
    %v791 = vmul.f32 %v711, %v751
    %v792 = vmul.f32 %v712, %v752
    %v793 = vmul.f32 %v713, %v753
    %v794 = vmul.f32 %v714, %v754
    %v795 = vmul.f32 %v715, %v755
    %v796 = vmul.f32 %v716, %v756
    %v797 = vmul.f32 %v717, %v757
    %v798 = vmul.f32 %v718, %v758
    %v799 = vmul.f32 %v719, %v759
    %v800 = vmul.f32 %v720, %v760
    %v801 = vmul.f32 %v161, %v201
    %v802 = vmul.f32 %v162, %v202
    %v803 = vmul.f32 %v163, %v203
    %v804 = vmul.f32 %v164, %v204
    %v805 = vmul.f32 %v165, %v205
    %v806 = vmul.f32 %v166, %v206
    %v807 = vmul.f32 %v167, %v207
    %v808 = vmul.f32 %v168, %v208
    %v809 = vmul.f32 %v169, %v209
    %v810 = vmul.f32 %v170, %v210
    %v811 = vmul.f32 %v171, %v211
    %v812 = vmul.f32 %v172, %v212
    %v813 = vmul.f32 %v173, %v213
    %v814 = vmul.f32 %v174, %v214
    %v815 = vmul.f32 %v175, %v215
    %v816 = vmul.f32 %v176, %v216
    %v817 = vmul.f32 %v177, %v217
    %v818 = vmul.f32 %v178, %v218
    %v819 = vmul.f32 %v179, %v219
    %v820 = vmul.f32 %v180, %v220
    %v821 = vmul.f32 %v181, %v221
    %v822 = vmul.f32 %v182, %v222
    %v823 = vmul.f32 %v183, %v223
    %v824 = vmul.f32 %v184, %v224
    %v825 = vmul.f32 %v185, %v225
    %v826 = vmul.f32 %v186, %v226
    %v827 = vmul.f32 %v187, %v227
    %v828 = vmul.f32 %v188, %v228
    %v829 = vmul.f32 %v189, %v229
    %v830 = vmul.f32 %v190, %v230
    %v831 = vmul.f32 %v191, %v231
    %v832 = vmul.f32 %v192, %v232
    %v833 = vmul.f32 %v193, %v233
    %v834 = vmul.f32 %v194, %v234
    %v835 = vmul.f32 %v195, %v235
    %v836 = vmul.f32 %v196, %v236
    %v837 = vmul.f32 %v197, %v237
    %v838 = vmul.f32 %v198, %v238
    %v839 = vmul.f32 %v199, %v239
    %v840 = vmul.f32 %v200, %v240
    %v841 = vadd.f32 %v761, %v801
    %v842 = vadd.f32 %v762, %v802
    %v843 = vadd.f32 %v763, %v803
    %v844 = vadd.f32 %v764, %v804
    %v845 = vadd.f32 %v765, %v805
    %v846 = vadd.f32 %v766, %v806
    %v847 = vadd.f32 %v767, %v807
    %v848 = vadd.f32 %v768, %v808
    %v849 = vadd.f32 %v769, %v809
    %v850 = vadd.f32 %v770, %v810
    %v851 = vadd.f32 %v771, %v811
    %v852 = vadd.f32 %v772, %v812
    %v853 = vadd.f32 %v773, %v813
    %v854 = vadd.f32 %v774, %v814
    %v855 = vadd.f32 %v775, %v815
    %v856 = vadd.f32 %v776, %v816
    %v857 = vadd.f32 %v777, %v817
    %v858 = vadd.f32 %v778, %v818
    %v859 = vadd.f32 %v779, %v819
    %v860 = vadd.f32 %v780, %v820
    %v861 = vadd.f32 %v781, %v821
    %v862 = vadd.f32 %v782, %v822
    %v863 = vadd.f32 %v783, %v823
    %v864 = vadd.f32 %v784, %v824
    %v865 = vadd.f32 %v785, %v825
    %v866 = vadd.f32 %v786, %v826
    %v867 = vadd.f32 %v787, %v827
    %v868 = vadd.f32 %v788, %v828
    %v869 = vadd.f32 %v789, %v829
    %v870 = vadd.f32 %v790, %v830
    %v871 = vadd.f32 %v791, %v831
    %v872 = vadd.f32 %v792, %v832
    %v873 = vadd.f32 %v793, %v833
    %v874 = vadd.f32 %v794, %v834
    %v875 = vadd.f32 %v795, %v835
    %v876 = vadd.f32 %v796, %v836
    %v877 = vadd.f32 %v797, %v837
    %v878 = vadd.f32 %v798, %v838
    %v879 = vadd.f32 %v799, %v839
    %v880 = vadd.f32 %v800, %v840
    %v881 = vmax.f32 %v121, 0.0
    %v882 = vmax.f32 %v122, 0.0
    %v883 = vmax.f32 %v123, 0.0
    %v884 = vmax.f32 %v124, 0.0
    %v885 = vmax.f32 %v125, 0.0
    %v886 = vmax.f32 %v126, 0.0
    %v887 = vmax.f32 %v127, 0.0
    %v888 = vmax.f32 %v128, 0.0
    %v889 = vmax.f32 %v129, 0.0
    %v890 = vmax.f32 %v130, 0.0
    %v891 = vmax.f32 %v131, 0.0
    %v892 = vmax.f32 %v132, 0.0
    %v893 = vmax.f32 %v133, 0.0
    %v894 = vmax.f32 %v134, 0.0
    %v895 = vmax.f32 %v135, 0.0
    %v896 = vmax.f32 %v136, 0.0
    %v897 = vmax.f32 %v137, 0.0
    %v898 = vmax.f32 %v138, 0.0
    %v899 = vmax.f32 %v139, 0.0
    %v900 = vmax.f32 %v140, 0.0
    %v901 = vmax.f32 %v141, 0.0
    %v902 = vmax.f32 %v142, 0.0
    %v903 = vmax.f32 %v143, 0.0
    %v904 = vmax.f32 %v144, 0.0
    %v905 = vmax.f32 %v145, 0.0
    %v906 = vmax.f32 %v146, 0.0
    %v907 = vmax.f32 %v147, 0.0
    %v908 = vmax.f32 %v148, 0.0
    %v909 = vmax.f32 %v149, 0.0
    %v910 = vmax.f32 %v150, 0.0
    %v911 = vmax.f32 %v151, 0.0
    %v912 = vmax.f32 %v152, 0.0
    %v913 = vmax.f32 %v153, 0.0
    %v914 = vmax.f32 %v154, 0.0
    %v915 = vmax.f32 %v155, 0.0
    %v916 = vmax.f32 %v156, 0.0
    %v917 = vmax.f32 %v157, 0.0
    %v918 = vmax.f32 %v158, 0.0
    %v919 = vmax.f32 %v159, 0.0
    %v920 = vmax.f32 %v160, 0.0
    %v921 = vmul.f32 %v121, %v161
    %v922 = vmul.f32 %v122, %v162
    %v923 = vmul.f32 %v123, %v163
    %v924 = vmul.f32 %v124, %v164
    %v925 = vmul.f32 %v125, %v165
    %v926 = vmul.f32 %v126, %v166
    %v927 = vmul.f32 %v127, %v167
    %v928 = vmul.f32 %v128, %v168
    %v929 = vmul.f32 %v129, %v169
    %v930 = vmul.f32 %v130, %v170
    %v931 = vmul.f32 %v131, %v171
    %v932 = vmul.f32 %v132, %v172
    %v933 = vmul.f32 %v133, %v173
    %v934 = vmul.f32 %v134, %v174
    %v935 = vmul.f32 %v135, %v175
    %v936 = vmul.f32 %v136, %v176
    %v937 = vmul.f32 %v137, %v177
    %v938 = vmul.f32 %v138, %v178
    %v939 = vmul.f32 %v139, %v179
    %v940 = vmul.f32 %v140, %v180
    %v941 = vmul.f32 %v141, %v181
    %v942 = vmul.f32 %v142, %v182
    %v943 = vmul.f32 %v143, %v183
    %v944 = vmul.f32 %v144, %v184
    %v945 = vmul.f32 %v145, %v185
    %v946 = vmul.f32 %v146, %v186
    %v947 = vmul.f32 %v147, %v187
    %v948 = vmul.f32 %v148, %v188
    %v949 = vmul.f32 %v149, %v189
    %v950 = vmul.f32 %v150, %v190
    %v951 = vmul.f32 %v151, %v191
    %v952 = vmul.f32 %v152, %v192
    %v953 = vmul.f32 %v153, %v193
    %v954 = vmul.f32 %v154, %v194
    %v955 = vmul.f32 %v155, %v195
    %v956 = vmul.f32 %v156, %v196
    %v957 = vmul.f32 %v157, %v197
    %v958 = vmul.f32 %v158, %v198
    %v959 = vmul.f32 %v159, %v199
    %v960 = vmul.f32 %v160, %v200
    %v961 = vsub.f32 %v881, %v921
    %v962 = vsub.f32 %v882, %v922
    %v963 = vsub.f32 %v883, %v923
    %v964 = vsub.f32 %v884, %v924
    %v965 = vsub.f32 %v885, %v925
    %v966 = vsub.f32 %v886, %v926
    %v967 = vsub.f32 %v887, %v927
    %v968 = vsub.f32 %v888, %v928
    %v969 = vsub.f32 %v889, %v929
    %v970 = vsub.f32 %v890, %v930
    %v971 = vsub.f32 %v891, %v931
    %v972 = vsub.f32 %v892, %v932
    %v973 = vsub.f32 %v893, %v933
    %v974 = vsub.f32 %v894, %v934
    %v975 = vsub.f32 %v895, %v935
    %v976 = vsub.f32 %v896, %v936
    %v977 = vsub.f32 %v897, %v937
    %v978 = vsub.f32 %v898, %v938
    %v979 = vsub.f32 %v899, %v939
    %v980 = vsub.f32 %v900, %v940
    %v981 = vsub.f32 %v901, %v941
    %v982 = vsub.f32 %v902, %v942
    %v983 = vsub.f32 %v903, %v943
    %v984 = vsub.f32 %v904, %v944
    %v985 = vsub.f32 %v905, %v945
    %v986 = vsub.f32 %v906, %v946
    %v987 = vsub.f32 %v907, %v947
    %v988 = vsub.f32 %v908, %v948
    %v989 = vsub.f32 %v909, %v949
    %v990 = vsub.f32 %v910, %v950
    %v991 = vsub.f32 %v911, %v951
    %v992 = vsub.f32 %v912, %v952
    %v993 = vsub.f32 %v913, %v953
    %v994 = vsub.f32 %v914, %v954
    %v995 = vsub.f32 %v915, %v955
    %v996 = vsub.f32 %v916, %v956
    %v997 = vsub.f32 %v917, %v957
    %v998 = vsub.f32 %v918, %v958
    %v999 = vsub.f32 %v919, %v959
    %v1000 = vsub.f32 %v920, %v960
    %v1001 = vadd.f32 %v322, 1.0
    %v1002 = vlog2.pop %v1001
    %v1003 = vmul.f32 %v1002, 0.6931472
    %v1004 = vmul.f32 -0.5, %v322
    %v1005 = vadd.f32 %v1004, 1.0
    %v1006 = vmul.f32 %v1005, %v322
    %v1007 = vand.u32 2147483647, %v322
    %vm1008 = vcmp.lt.f32.partialorder %v1007, 0.0004427343
    %v1009 = vsel %vm1008, %v1006, %v1003
    %v1010 = vadd.f32 %v324, 1.0
    %v1011 = vlog2.pop %v1010
    %v1012 = vmul.f32 %v1011, 0.6931472
    %v1013 = vmul.f32 -0.5, %v324
    %v1014 = vadd.f32 %v1013, 1.0
    %v1015 = vmul.f32 %v1014, %v324
    %v1016 = vand.u32 2147483647, %v324
    %vm1017 = vcmp.lt.f32.partialorder %v1016, 0.0004427343
    %v1018 = vsel %vm1017, %v1015, %v1012
    %v1019 = vadd.f32 %v326, 1.0
    %v1020 = vlog2.pop %v1019
    %v1021 = vmul.f32 %v1020, 0.6931472
    %v1022 = vmul.f32 -0.5, %v326
    %v1023 = vadd.f32 %v1022, 1.0
    %v1024 = vmul.f32 %v1023, %v326
    %v1025 = vand.u32 2147483647, %v326
    %vm1026 = vcmp.lt.f32.partialorder %v1025, 0.0004427343
    %v1027 = vsel %vm1026, %v1024, %v1021
    %v1028 = vadd.f32 %v328, 1.0
    %v1029 = vlog2.pop %v1028
    %v1030 = vmul.f32 %v1029, 0.6931472
    %v1031 = vmul.f32 -0.5, %v328
    %v1032 = vadd.f32 %v1031, 1.0
    %v1033 = vmul.f32 %v1032, %v328
    %v1034 = vand.u32 2147483647, %v328
    %vm1035 = vcmp.lt.f32.partialorder %v1034, 0.0004427343
    %v1036 = vsel %vm1035, %v1033, %v1030
    %v1037 = vadd.f32 %v330, 1.0
    %v1038 = vlog2.pop %v1037
    %v1039 = vmul.f32 %v1038, 0.6931472
    %v1040 = vmul.f32 -0.5, %v330
    %v1041 = vadd.f32 %v1040, 1.0
    %v1042 = vmul.f32 %v1041, %v330
    %v1043 = vand.u32 2147483647, %v330
    %vm1044 = vcmp.lt.f32.partialorder %v1043, 0.0004427343
    %v1045 = vsel %vm1044, %v1042, %v1039
    %v1046 = vadd.f32 %v332, 1.0
    %v1047 = vlog2.pop %v1046
    %v1048 = vmul.f32 %v1047, 0.6931472
    %v1049 = vmul.f32 -0.5, %v332
    %v1050 = vadd.f32 %v1049, 1.0
    %v1051 = vmul.f32 %v1050, %v332
    %v1052 = vand.u32 2147483647, %v332
    %vm1053 = vcmp.lt.f32.partialorder %v1052, 0.0004427343
    %v1054 = vsel %vm1053, %v1051, %v1048
    %v1055 = vadd.f32 %v334, 1.0
    %v1056 = vlog2.pop %v1055
    %v1057 = vmul.f32 %v1056, 0.6931472
    %v1058 = vmul.f32 -0.5, %v334
    %v1059 = vadd.f32 %v1058, 1.0
    %v1060 = vmul.f32 %v1059, %v334
    %v1061 = vand.u32 2147483647, %v334
    %vm1062 = vcmp.lt.f32.partialorder %v1061, 0.0004427343
    %v1063 = vsel %vm1062, %v1060, %v1057
    %v1064 = vadd.f32 %v336, 1.0
    %v1065 = vlog2.pop %v1064
    %v1066 = vmul.f32 %v1065, 0.6931472
    %v1067 = vmul.f32 -0.5, %v336
    %v1068 = vadd.f32 %v1067, 1.0
    %v1069 = vmul.f32 %v1068, %v336
    %v1070 = vand.u32 2147483647, %v336
    %vm1071 = vcmp.lt.f32.partialorder %v1070, 0.0004427343
    %v1072 = vsel %vm1071, %v1069, %v1066
    %v1073 = vadd.f32 %v338, 1.0
    %v1074 = vlog2.pop %v1073
    %v1075 = vmul.f32 %v1074, 0.6931472
    %v1076 = vmul.f32 -0.5, %v338
    %v1077 = vadd.f32 %v1076, 1.0
    %v1078 = vmul.f32 %v1077, %v338
    %v1079 = vand.u32 2147483647, %v338
    %vm1080 = vcmp.lt.f32.partialorder %v1079, 0.0004427343
    %v1081 = vsel %vm1080, %v1078, %v1075
    %v1082 = vadd.f32 %v340, 1.0
    %v1083 = vlog2.pop %v1082
    %v1084 = vmul.f32 %v1083, 0.6931472
    %v1085 = vmul.f32 -0.5, %v340
    %v1086 = vadd.f32 %v1085, 1.0
    %v1087 = vmul.f32 %v1086, %v340
    %v1088 = vand.u32 2147483647, %v340
    %vm1089 = vcmp.lt.f32.partialorder %v1088, 0.0004427343
    %v1090 = vsel %vm1089, %v1087, %v1084
    %v1091 = vadd.f32 %v342, 1.0
    %v1092 = vlog2.pop %v1091
    %v1093 = vmul.f32 %v1092, 0.6931472
    %v1094 = vmul.f32 -0.5, %v342
    %v1095 = vadd.f32 %v1094, 1.0
    %v1096 = vmul.f32 %v1095, %v342
    %v1097 = vand.u32 2147483647, %v342
    %vm1098 = vcmp.lt.f32.partialorder %v1097, 0.0004427343
    %v1099 = vsel %vm1098, %v1096, %v1093
    %v1100 = vadd.f32 %v344, 1.0
    %v1101 = vlog2.pop %v1100
    %v1102 = vmul.f32 %v1101, 0.6931472
    %v1103 = vmul.f32 -0.5, %v344
    %v1104 = vadd.f32 %v1103, 1.0
    %v1105 = vmul.f32 %v1104, %v344
    %v1106 = vand.u32 2147483647, %v344
    %vm1107 = vcmp.lt.f32.partialorder %v1106, 0.0004427343
    %v1108 = vsel %vm1107, %v1105, %v1102
    %v1109 = vadd.f32 %v346, 1.0
    %v1110 = vlog2.pop %v1109
    %v1111 = vmul.f32 %v1110, 0.6931472
    %v1112 = vmul.f32 -0.5, %v346
    %v1113 = vadd.f32 %v1112, 1.0
    %v1114 = vmul.f32 %v1113, %v346
    %v1115 = vand.u32 2147483647, %v346
    %vm1116 = vcmp.lt.f32.partialorder %v1115, 0.0004427343
    %v1117 = vsel %vm1116, %v1114, %v1111
    %v1118 = vadd.f32 %v348, 1.0
    %v1119 = vlog2.pop %v1118
    %v1120 = vmul.f32 %v1119, 0.6931472
    %v1121 = vmul.f32 -0.5, %v348
    %v1122 = vadd.f32 %v1121, 1.0
    %v1123 = vmul.f32 %v1122, %v348
    %v1124 = vand.u32 2147483647, %v348
    %vm1125 = vcmp.lt.f32.partialorder %v1124, 0.0004427343
    %v1126 = vsel %vm1125, %v1123, %v1120
    %v1127 = vadd.f32 %v350, 1.0
    %v1128 = vlog2.pop %v1127
    %v1129 = vmul.f32 %v1128, 0.6931472
    %v1130 = vmul.f32 -0.5, %v350
    %v1131 = vadd.f32 %v1130, 1.0
    %v1132 = vmul.f32 %v1131, %v350
    %v1133 = vand.u32 2147483647, %v350
    %vm1134 = vcmp.lt.f32.partialorder %v1133, 0.0004427343
    %v1135 = vsel %vm1134, %v1132, %v1129
    %v1136 = vadd.f32 %v352, 1.0
    %v1137 = vlog2.pop %v1136
    %v1138 = vmul.f32 %v1137, 0.6931472
    %v1139 = vmul.f32 -0.5, %v352
    %v1140 = vadd.f32 %v1139, 1.0
    %v1141 = vmul.f32 %v1140, %v352
    %v1142 = vand.u32 2147483647, %v352
    %vm1143 = vcmp.lt.f32.partialorder %v1142, 0.0004427343
    %v1144 = vsel %vm1143, %v1141, %v1138
    %v1145 = vadd.f32 %v354, 1.0
    %v1146 = vlog2.pop %v1145
    %v1147 = vmul.f32 %v1146, 0.6931472
    %v1148 = vmul.f32 -0.5, %v354
    %v1149 = vadd.f32 %v1148, 1.0
    %v1150 = vmul.f32 %v1149, %v354
    %v1151 = vand.u32 2147483647, %v354
    %vm1152 = vcmp.lt.f32.partialorder %v1151, 0.0004427343
    %v1153 = vsel %vm1152, %v1150, %v1147
    %v1154 = vadd.f32 %v356, 1.0
    %v1155 = vlog2.pop %v1154
    %v1156 = vmul.f32 %v1155, 0.6931472
    %v1157 = vmul.f32 -0.5, %v356
    %v1158 = vadd.f32 %v1157, 1.0
    %v1159 = vmul.f32 %v1158, %v356
    %v1160 = vand.u32 2147483647, %v356
    %vm1161 = vcmp.lt.f32.partialorder %v1160, 0.0004427343
    %v1162 = vsel %vm1161, %v1159, %v1156
    %v1163 = vadd.f32 %v358, 1.0
    %v1164 = vlog2.pop %v1163
    %v1165 = vmul.f32 %v1164, 0.6931472
    %v1166 = vmul.f32 -0.5, %v358
    %v1167 = vadd.f32 %v1166, 1.0
    %v1168 = vmul.f32 %v1167, %v358
    %v1169 = vand.u32 2147483647, %v358
    %vm1170 = vcmp.lt.f32.partialorder %v1169, 0.0004427343
    %v1171 = vsel %vm1170, %v1168, %v1165
    %v1172 = vadd.f32 %v360, 1.0
    %v1173 = vlog2.pop %v1172
    %v1174 = vmul.f32 %v1173, 0.6931472
    %v1175 = vmul.f32 -0.5, %v360
    %v1176 = vadd.f32 %v1175, 1.0
    %v1177 = vmul.f32 %v1176, %v360
    %v1178 = vand.u32 2147483647, %v360
    %vm1179 = vcmp.lt.f32.partialorder %v1178, 0.0004427343
    %v1180 = vsel %vm1179, %v1177, %v1174
    %v1181 = vadd.f32 %v362, 1.0
    %v1182 = vlog2.pop %v1181
    %v1183 = vmul.f32 %v1182, 0.6931472
    %v1184 = vmul.f32 -0.5, %v362
    %v1185 = vadd.f32 %v1184, 1.0
    %v1186 = vmul.f32 %v1185, %v362
    %v1187 = vand.u32 2147483647, %v362
    %vm1188 = vcmp.lt.f32.partialorder %v1187, 0.0004427343
    %v1189 = vsel %vm1188, %v1186, %v1183
    %v1190 = vadd.f32 %v364, 1.0
    %v1191 = vlog2.pop %v1190
    %v1192 = vmul.f32 %v1191, 0.6931472
    %v1193 = vmul.f32 -0.5, %v364
    %v1194 = vadd.f32 %v1193, 1.0
    %v1195 = vmul.f32 %v1194, %v364
    %v1196 = vand.u32 2147483647, %v364
    %vm1197 = vcmp.lt.f32.partialorder %v1196, 0.0004427343
    %v1198 = vsel %vm1197, %v1195, %v1192
    %v1199 = vadd.f32 %v366, 1.0
    %v1200 = vlog2.pop %v1199
    %v1201 = vmul.f32 %v1200, 0.6931472
    %v1202 = vmul.f32 -0.5, %v366
    %v1203 = vadd.f32 %v1202, 1.0
    %v1204 = vmul.f32 %v1203, %v366
    %v1205 = vand.u32 2147483647, %v366
    %vm1206 = vcmp.lt.f32.partialorder %v1205, 0.0004427343
    %v1207 = vsel %vm1206, %v1204, %v1201
    %v1208 = vadd.f32 %v368, 1.0
    %v1209 = vlog2.pop %v1208
    %v1210 = vmul.f32 %v1209, 0.6931472
    %v1211 = vmul.f32 -0.5, %v368
    %v1212 = vadd.f32 %v1211, 1.0
    %v1213 = vmul.f32 %v1212, %v368
    %v1214 = vand.u32 2147483647, %v368
    %vm1215 = vcmp.lt.f32.partialorder %v1214, 0.0004427343
    %v1216 = vsel %vm1215, %v1213, %v1210
    %v1217 = vadd.f32 %v370, 1.0
    %v1218 = vlog2.pop %v1217
    %v1219 = vmul.f32 %v1218, 0.6931472
    %v1220 = vmul.f32 -0.5, %v370
    %v1221 = vadd.f32 %v1220, 1.0
    %v1222 = vmul.f32 %v1221, %v370
    %v1223 = vand.u32 2147483647, %v370
    %vm1224 = vcmp.lt.f32.partialorder %v1223, 0.0004427343
    %v1225 = vsel %vm1224, %v1222, %v1219
    %v1226 = vadd.f32 %v372, 1.0
    %v1227 = vlog2.pop %v1226
    %v1228 = vmul.f32 %v1227, 0.6931472
    %v1229 = vmul.f32 -0.5, %v372
    %v1230 = vadd.f32 %v1229, 1.0
    %v1231 = vmul.f32 %v1230, %v372
    %v1232 = vand.u32 2147483647, %v372
    %vm1233 = vcmp.lt.f32.partialorder %v1232, 0.0004427343
    %v1234 = vsel %vm1233, %v1231, %v1228
    %v1235 = vadd.f32 %v374, 1.0
    %v1236 = vlog2.pop %v1235
    %v1237 = vmul.f32 %v1236, 0.6931472
    %v1238 = vmul.f32 -0.5, %v374
    %v1239 = vadd.f32 %v1238, 1.0
    %v1240 = vmul.f32 %v1239, %v374
    %v1241 = vand.u32 2147483647, %v374
    %vm1242 = vcmp.lt.f32.partialorder %v1241, 0.0004427343
    %v1243 = vsel %vm1242, %v1240, %v1237
    %v1244 = vadd.f32 %v376, 1.0
    %v1245 = vlog2.pop %v1244
    %v1246 = vmul.f32 %v1245, 0.6931472
    %v1247 = vmul.f32 -0.5, %v376
    %v1248 = vadd.f32 %v1247, 1.0
    %v1249 = vmul.f32 %v1248, %v376
    %v1250 = vand.u32 2147483647, %v376
    %vm1251 = vcmp.lt.f32.partialorder %v1250, 0.0004427343
    %v1252 = vsel %vm1251, %v1249, %v1246
    %v1253 = vadd.f32 %v378, 1.0
    %v1254 = vlog2.pop %v1253
    %v1255 = vmul.f32 %v1254, 0.6931472
    %v1256 = vmul.f32 -0.5, %v378
    %v1257 = vadd.f32 %v1256, 1.0
    %v1258 = vmul.f32 %v1257, %v378
    %v1259 = vand.u32 2147483647, %v378
    %vm1260 = vcmp.lt.f32.partialorder %v1259, 0.0004427343
    %v1261 = vsel %vm1260, %v1258, %v1255
    %v1262 = vadd.f32 %v380, 1.0
    %v1263 = vlog2.pop %v1262
    %v1264 = vmul.f32 %v1263, 0.6931472
    %v1265 = vmul.f32 -0.5, %v380
    %v1266 = vadd.f32 %v1265, 1.0
    %v1267 = vmul.f32 %v1266, %v380
    %v1268 = vand.u32 2147483647, %v380
    %vm1269 = vcmp.lt.f32.partialorder %v1268, 0.0004427343
    %v1270 = vsel %vm1269, %v1267, %v1264
    %v1271 = vadd.f32 %v382, 1.0
    %v1272 = vlog2.pop %v1271
    %v1273 = vmul.f32 %v1272, 0.6931472
    %v1274 = vmul.f32 -0.5, %v382
    %v1275 = vadd.f32 %v1274, 1.0
    %v1276 = vmul.f32 %v1275, %v382
    %v1277 = vand.u32 2147483647, %v382
    %vm1278 = vcmp.lt.f32.partialorder %v1277, 0.0004427343
    %v1279 = vsel %vm1278, %v1276, %v1273
    %v1280 = vadd.f32 %v384, 1.0
    %v1281 = vlog2.pop %v1280
    %v1282 = vmul.f32 %v1281, 0.6931472
    %v1283 = vmul.f32 -0.5, %v384
    %v1284 = vadd.f32 %v1283, 1.0
    %v1285 = vmul.f32 %v1284, %v384
    %v1286 = vand.u32 2147483647, %v384
    %vm1287 = vcmp.lt.f32.partialorder %v1286, 0.0004427343
    %v1288 = vsel %vm1287, %v1285, %v1282
    %v1289 = vadd.f32 %v386, 1.0
    %v1290 = vlog2.pop %v1289
    %v1291 = vmul.f32 %v1290, 0.6931472
    %v1292 = vmul.f32 -0.5, %v386
    %v1293 = vadd.f32 %v1292, 1.0
    %v1294 = vmul.f32 %v1293, %v386
    %v1295 = vand.u32 2147483647, %v386
    %vm1296 = vcmp.lt.f32.partialorder %v1295, 0.0004427343
    %v1297 = vsel %vm1296, %v1294, %v1291
    %v1298 = vadd.f32 %v388, 1.0
    %v1299 = vlog2.pop %v1298
    %v1300 = vmul.f32 %v1299, 0.6931472
    %v1301 = vmul.f32 -0.5, %v388
    %v1302 = vadd.f32 %v1301, 1.0
    %v1303 = vmul.f32 %v1302, %v388
    %v1304 = vand.u32 2147483647, %v388
    %vm1305 = vcmp.lt.f32.partialorder %v1304, 0.0004427343
    %v1306 = vsel %vm1305, %v1303, %v1300
    %v1307 = vadd.f32 %v390, 1.0
    %v1308 = vlog2.pop %v1307
    %v1309 = vmul.f32 %v1308, 0.6931472
    %v1310 = vmul.f32 -0.5, %v390
    %v1311 = vadd.f32 %v1310, 1.0
    %v1312 = vmul.f32 %v1311, %v390
    %v1313 = vand.u32 2147483647, %v390
    %vm1314 = vcmp.lt.f32.partialorder %v1313, 0.0004427343
    %v1315 = vsel %vm1314, %v1312, %v1309
    %v1316 = vadd.f32 %v392, 1.0
    %v1317 = vlog2.pop %v1316
    %v1318 = vmul.f32 %v1317, 0.6931472
    %v1319 = vmul.f32 -0.5, %v392
    %v1320 = vadd.f32 %v1319, 1.0
    %v1321 = vmul.f32 %v1320, %v392
    %v1322 = vand.u32 2147483647, %v392
    %vm1323 = vcmp.lt.f32.partialorder %v1322, 0.0004427343
    %v1324 = vsel %vm1323, %v1321, %v1318
    %v1325 = vadd.f32 %v394, 1.0
    %v1326 = vlog2.pop %v1325
    %v1327 = vmul.f32 %v1326, 0.6931472
    %v1328 = vmul.f32 -0.5, %v394
    %v1329 = vadd.f32 %v1328, 1.0
    %v1330 = vmul.f32 %v1329, %v394
    %v1331 = vand.u32 2147483647, %v394
    %vm1332 = vcmp.lt.f32.partialorder %v1331, 0.0004427343
    %v1333 = vsel %vm1332, %v1330, %v1327
    %v1334 = vadd.f32 %v396, 1.0
    %v1335 = vlog2.pop %v1334
    %v1336 = vmul.f32 %v1335, 0.6931472
    %v1337 = vmul.f32 -0.5, %v396
    %v1338 = vadd.f32 %v1337, 1.0
    %v1339 = vmul.f32 %v1338, %v396
    %v1340 = vand.u32 2147483647, %v396
    %vm1341 = vcmp.lt.f32.partialorder %v1340, 0.0004427343
    %v1342 = vsel %vm1341, %v1339, %v1336
    %v1343 = vadd.f32 %v398, 1.0
    %v1344 = vlog2.pop %v1343
    %v1345 = vmul.f32 %v1344, 0.6931472
    %v1346 = vmul.f32 -0.5, %v398
    %v1347 = vadd.f32 %v1346, 1.0
    %v1348 = vmul.f32 %v1347, %v398
    %v1349 = vand.u32 2147483647, %v398
    %vm1350 = vcmp.lt.f32.partialorder %v1349, 0.0004427343
    %v1351 = vsel %vm1350, %v1348, %v1345
    %v1352 = vadd.f32 %v400, 1.0
    %v1353 = vlog2.pop %v1352
    %v1354 = vmul.f32 %v1353, 0.6931472
    %v1355 = vmul.f32 -0.5, %v400
    %v1356 = vadd.f32 %v1355, 1.0
    %v1357 = vmul.f32 %v1356, %v400
    %v1358 = vand.u32 2147483647, %v400
    %vm1359 = vcmp.lt.f32.partialorder %v1358, 0.0004427343
    %v1360 = vsel %vm1359, %v1357, %v1354
    %v1361 = vadd.f32 %v961, %v1009
    %v1362 = vadd.f32 %v962, %v1018
    %v1363 = vadd.f32 %v963, %v1027
    %v1364 = vadd.f32 %v964, %v1036
    %v1365 = vadd.f32 %v965, %v1045
    %v1366 = vadd.f32 %v966, %v1054
    %v1367 = vadd.f32 %v967, %v1063
    %v1368 = vadd.f32 %v968, %v1072
    %v1369 = vadd.f32 %v969, %v1081
    %v1370 = vadd.f32 %v970, %v1090
    %v1371 = vadd.f32 %v971, %v1099
    %v1372 = vadd.f32 %v972, %v1108
    %v1373 = vadd.f32 %v973, %v1117
    %v1374 = vadd.f32 %v974, %v1126
    %v1375 = vadd.f32 %v975, %v1135
    %v1376 = vadd.f32 %v976, %v1144
    %v1377 = vadd.f32 %v977, %v1153
    %v1378 = vadd.f32 %v978, %v1162
    %v1379 = vadd.f32 %v979, %v1171
    %v1380 = vadd.f32 %v980, %v1180
    %v1381 = vadd.f32 %v981, %v1189
    %v1382 = vadd.f32 %v982, %v1198
    %v1383 = vadd.f32 %v983, %v1207
    %v1384 = vadd.f32 %v984, %v1216
    %v1385 = vadd.f32 %v985, %v1225
    %v1386 = vadd.f32 %v986, %v1234
    %v1387 = vadd.f32 %v987, %v1243
    %v1388 = vadd.f32 %v988, %v1252
    %v1389 = vadd.f32 %v989, %v1261
    %v1390 = vadd.f32 %v990, %v1270
    %v1391 = vadd.f32 %v991, %v1279
    %v1392 = vadd.f32 %v992, %v1288
    %v1393 = vadd.f32 %v993, %v1297
    %v1394 = vadd.f32 %v994, %v1306
    %v1395 = vadd.f32 %v995, %v1315
    %v1396 = vadd.f32 %v996, %v1324
    %v1397 = vadd.f32 %v997, %v1333
    %v1398 = vadd.f32 %v998, %v1342
    %v1399 = vadd.f32 %v999, %v1351
    %v1400 = vadd.f32 %v1000, %v1360
    %v1401 = vld [vmem:[#allocation2] sm:$0xff]
    %v1402 = vld [vmem:[#allocation2 + $0x8] sm:$0xff]
    %v1403 = vld [vmem:[#allocation2 + $0x10] sm:$0xff]
    %v1404 = vld [vmem:[#allocation2 + $0x18] sm:$0xff]
    %v1405 = vld [vmem:[#allocation2 + $0x20] sm:$0xff]
    %v1406 = vld [vmem:[#allocation2 + $0x28] sm:$0xff]
    %v1407 = vld [vmem:[#allocation2 + $0x30] sm:$0xff]
    %v1408 = vld [vmem:[#allocation2 + $0x38] sm:$0xff]
    %v1409 = vld [vmem:[#allocation2 + $0x40] sm:$0xff]
    %v1410 = vld [vmem:[#allocation2 + $0x48] sm:$0xff]
    %v1411 = vld [vmem:[#allocation2 + $0x50] sm:$0xff]
    %v1412 = vld [vmem:[#allocation2 + $0x58] sm:$0xff]
    %v1413 = vld [vmem:[#allocation2 + $0x60] sm:$0xff]
    %v1414 = vld [vmem:[#allocation2 + $0x68] sm:$0xff]
    %v1415 = vld [vmem:[#allocation2 + $0x70] sm:$0xff]
    %v1416 = vld [vmem:[#allocation2 + $0x78] sm:$0xff]
    %v1417 = vld [vmem:[#allocation2 + $0x80] sm:$0xff]
    %v1418 = vld [vmem:[#allocation2 + $0x88] sm:$0xff]
    %v1419 = vld [vmem:[#allocation2 + $0x90] sm:$0xff]
    %v1420 = vld [vmem:[#allocation2 + $0x98] sm:$0xff]
    %v1421 = vld [vmem:[#allocation2 + $0xa0] sm:$0xff]
    %v1422 = vld [vmem:[#allocation2 + $0xa8] sm:$0xff]
    %v1423 = vld [vmem:[#allocation2 + $0xb0] sm:$0xff]
    %v1424 = vld [vmem:[#allocation2 + $0xb8] sm:$0xff]
    %v1425 = vld [vmem:[#allocation2 + $0xc0] sm:$0xff]
    %v1426 = vld [vmem:[#allocation2 + $0xc8] sm:$0xff]
    %v1427 = vld [vmem:[#allocation2 + $0xd0] sm:$0xff]
    %v1428 = vld [vmem:[#allocation2 + $0xd8] sm:$0xff]
    %v1429 = vld [vmem:[#allocation2 + $0xe0] sm:$0xff]
    %v1430 = vld [vmem:[#allocation2 + $0xe8] sm:$0xff]
    %v1431 = vld [vmem:[#allocation2 + $0xf0] sm:$0xff]
    %v1432 = vld [vmem:[#allocation2 + $0xf8] sm:$0xff]
    %v1433 = vld [vmem:[#allocation2 + $0x100] sm:$0xff]
    %v1434 = vld [vmem:[#allocation2 + $0x108] sm:$0xff]
    %v1435 = vld [vmem:[#allocation2 + $0x110] sm:$0xff]
    %v1436 = vld [vmem:[#allocation2 + $0x118] sm:$0xff]
    %v1437 = vld [vmem:[#allocation2 + $0x120] sm:$0xff]
    %v1438 = vld [vmem:[#allocation2 + $0x128] sm:$0xff]
    %v1439 = vld [vmem:[#allocation2 + $0x130] sm:$0xff]
    %v1440 = vld [vmem:[#allocation2 + $0x138] sm:$0xff]
    %v1441 = vmul.f32 %v1361, %v841
    %v1442 = vmul.f32 %v1362, %v842
    %v1443 = vmul.f32 %v1363, %v843
    %v1444 = vmul.f32 %v1364, %v844
    %v1445 = vmul.f32 %v1365, %v845
    %v1446 = vmul.f32 %v1366, %v846
    %v1447 = vmul.f32 %v1367, %v847
    %v1448 = vmul.f32 %v1368, %v848
    %v1449 = vmul.f32 %v1369, %v849
    %v1450 = vmul.f32 %v1370, %v850
    %v1451 = vmul.f32 %v1371, %v851
    %v1452 = vmul.f32 %v1372, %v852
    %v1453 = vmul.f32 %v1373, %v853
    %v1454 = vmul.f32 %v1374, %v854
    %v1455 = vmul.f32 %v1375, %v855
    %v1456 = vmul.f32 %v1376, %v856
    %v1457 = vmul.f32 %v1377, %v857
    %v1458 = vmul.f32 %v1378, %v858
    %v1459 = vmul.f32 %v1379, %v859
    %v1460 = vmul.f32 %v1380, %v860
    %v1461 = vmul.f32 %v1381, %v861
    %v1462 = vmul.f32 %v1382, %v862
    %v1463 = vmul.f32 %v1383, %v863
    %v1464 = vmul.f32 %v1384, %v864
    %v1465 = vmul.f32 %v1385, %v865
    %v1466 = vmul.f32 %v1386, %v866
    %v1467 = vmul.f32 %v1387, %v867
    %v1468 = vmul.f32 %v1388, %v868
    %v1469 = vmul.f32 %v1389, %v869
    %v1470 = vmul.f32 %v1390, %v870
    %v1471 = vmul.f32 %v1391, %v871
    %v1472 = vmul.f32 %v1392, %v872
    %v1473 = vmul.f32 %v1393, %v873
    %v1474 = vmul.f32 %v1394, %v874
    %v1475 = vmul.f32 %v1395, %v875
    %v1476 = vmul.f32 %v1396, %v876
    %v1477 = vmul.f32 %v1397, %v877
    %v1478 = vmul.f32 %v1398, %v878
    %v1479 = vmul.f32 %v1399, %v879
    %v1480 = vmul.f32 %v1400, %v880
    %v1481 = vadd.f32 %v1401, %v1441
    %v1482 = vadd.f32 %v1402, %v1442
    %v1483 = vadd.f32 %v1403, %v1443
    %v1484 = vadd.f32 %v1404, %v1444
    %v1485 = vadd.f32 %v1405, %v1445
    %v1486 = vadd.f32 %v1406, %v1446
    %v1487 = vadd.f32 %v1407, %v1447
    %v1488 = vadd.f32 %v1408, %v1448
    %v1489 = vadd.f32 %v1409, %v1449
    %v1490 = vadd.f32 %v1410, %v1450
    %v1491 = vadd.f32 %v1411, %v1451
    %v1492 = vadd.f32 %v1412, %v1452
    %v1493 = vadd.f32 %v1413, %v1453
    %v1494 = vadd.f32 %v1414, %v1454
    %v1495 = vadd.f32 %v1415, %v1455
    %v1496 = vadd.f32 %v1416, %v1456
    %v1497 = vadd.f32 %v1417, %v1457
    %v1498 = vadd.f32 %v1418, %v1458
    %v1499 = vadd.f32 %v1419, %v1459
    %v1500 = vadd.f32 %v1420, %v1460
    %v1501 = vadd.f32 %v1421, %v1461
    %v1502 = vadd.f32 %v1422, %v1462
    %v1503 = vadd.f32 %v1423, %v1463
    %v1504 = vadd.f32 %v1424, %v1464
    %v1505 = vadd.f32 %v1425, %v1465
    %v1506 = vadd.f32 %v1426, %v1466
    %v1507 = vadd.f32 %v1427, %v1467
    %v1508 = vadd.f32 %v1428, %v1468
    %v1509 = vadd.f32 %v1429, %v1469
    %v1510 = vadd.f32 %v1430, %v1470
    %v1511 = vadd.f32 %v1431, %v1471
    %v1512 = vadd.f32 %v1432, %v1472
    %v1513 = vadd.f32 %v1433, %v1473
    %v1514 = vadd.f32 %v1434, %v1474
    %v1515 = vadd.f32 %v1435, %v1475
    %v1516 = vadd.f32 %v1436, %v1476
    %v1517 = vadd.f32 %v1437, %v1477
    %v1518 = vadd.f32 %v1438, %v1478
    %v1519 = vadd.f32 %v1439, %v1479
    %v1520 = vadd.f32 %v1440, %v1480
    %1521 = vst [vmem:[#allocation2] sm:$0xff] %v1481
    %1522 = vst [vmem:[#allocation2 + $0x8] sm:$0xff] %v1482
    %1523 = vst [vmem:[#allocation2 + $0x10] sm:$0xff] %v1483
    %1524 = vst [vmem:[#allocation2 + $0x18] sm:$0xff] %v1484
    %1525 = vst [vmem:[#allocation2 + $0x20] sm:$0xff] %v1485
    %1526 = vst [vmem:[#allocation2 + $0x28] sm:$0xff] %v1486
    %1527 = vst [vmem:[#allocation2 + $0x30] sm:$0xff] %v1487
    %1528 = vst [vmem:[#allocation2 + $0x38] sm:$0xff] %v1488
    %1529 = vst [vmem:[#allocation2 + $0x40] sm:$0xff] %v1489
    %1530 = vst [vmem:[#allocation2 + $0x48] sm:$0xff] %v1490
    %1531 = vst [vmem:[#allocation2 + $0x50] sm:$0xff] %v1491
    %1532 = vst [vmem:[#allocation2 + $0x58] sm:$0xff] %v1492
    %1533 = vst [vmem:[#allocation2 + $0x60] sm:$0xff] %v1493
    %1534 = vst [vmem:[#allocation2 + $0x68] sm:$0xff] %v1494
    %1535 = vst [vmem:[#allocation2 + $0x70] sm:$0xff] %v1495
    %1536 = vst [vmem:[#allocation2 + $0x78] sm:$0xff] %v1496
    %1537 = vst [vmem:[#allocation2 + $0x80] sm:$0xff] %v1497
    %1538 = vst [vmem:[#allocation2 + $0x88] sm:$0xff] %v1498
    %1539 = vst [vmem:[#allocation2 + $0x90] sm:$0xff] %v1499
    %1540 = vst [vmem:[#allocation2 + $0x98] sm:$0xff] %v1500
    %1541 = vst [vmem:[#allocation2 + $0xa0] sm:$0xff] %v1501
    %1542 = vst [vmem:[#allocation2 + $0xa8] sm:$0xff] %v1502
    %1543 = vst [vmem:[#allocation2 + $0xb0] sm:$0xff] %v1503
    %1544 = vst [vmem:[#allocation2 + $0xb8] sm:$0xff] %v1504
    %1545 = vst [vmem:[#allocation2 + $0xc0] sm:$0xff] %v1505
    %1546 = vst [vmem:[#allocation2 + $0xc8] sm:$0xff] %v1506
    %1547 = vst [vmem:[#allocation2 + $0xd0] sm:$0xff] %v1507
    %1548 = vst [vmem:[#allocation2 + $0xd8] sm:$0xff] %v1508
    %1549 = vst [vmem:[#allocation2 + $0xe0] sm:$0xff] %v1509
    %1550 = vst [vmem:[#allocation2 + $0xe8] sm:$0xff] %v1510
    %1551 = vst [vmem:[#allocation2 + $0xf0] sm:$0xff] %v1511
    %1552 = vst [vmem:[#allocation2 + $0xf8] sm:$0xff] %v1512
    %1553 = vst [vmem:[#allocation2 + $0x100] sm:$0xff] %v1513
    %1554 = vst [vmem:[#allocation2 + $0x108] sm:$0xff] %v1514
    %1555 = vst [vmem:[#allocation2 + $0x110] sm:$0xff] %v1515
    %1556 = vst [vmem:[#allocation2 + $0x118] sm:$0xff] %v1516
    %1557 = vst [vmem:[#allocation2 + $0x120] sm:$0xff] %v1517
    %1558 = vst [vmem:[#allocation2 + $0x128] sm:$0xff] %v1518
    %1559 = vst [vmem:[#allocation2 + $0x130] sm:$0xff] %v1519
    %1560 = vst [vmem:[#allocation2 + $0x138] sm:$0xff] %v1520
    // Predicated region
    $region30: #{tpu_custom_call.1} parent=1 // pred_check
      %p1561 = pneg %p77
    $region31: #{tpu_custom_call.1} parent=1 // pred_check_branch
      %1563 = sbr.rel (%p1561) target = $region33
    $region32: #{tpu_custom_call.1} parent=1 // pred_region
      %v1564 = vld [vmem:[#allocation2] sm:$0xff]
      %v1565 = vld [vmem:[#allocation2 + $0x8] sm:$0xff]
      %v1566 = vld [vmem:[#allocation2 + $0x10] sm:$0xff]
      %v1567 = vld [vmem:[#allocation2 + $0x18] sm:$0xff]
      %v1568 = vld [vmem:[#allocation2 + $0x20] sm:$0xff]
      %v1569 = vld [vmem:[#allocation2 + $0x28] sm:$0xff]
      %v1570 = vld [vmem:[#allocation2 + $0x30] sm:$0xff]
      %v1571 = vld [vmem:[#allocation2 + $0x38] sm:$0xff]
      %v1572 = vld [vmem:[#allocation2 + $0x40] sm:$0xff]
      %v1573 = vld [vmem:[#allocation2 + $0x48] sm:$0xff]
      %v1574 = vld [vmem:[#allocation2 + $0x50] sm:$0xff]
      %v1575 = vld [vmem:[#allocation2 + $0x58] sm:$0xff]
      %v1576 = vld [vmem:[#allocation2 + $0x60] sm:$0xff]
      %v1577 = vld [vmem:[#allocation2 + $0x68] sm:$0xff]
      %v1578 = vld [vmem:[#allocation2 + $0x70] sm:$0xff]
      %v1579 = vld [vmem:[#allocation2 + $0x78] sm:$0xff]
      %v1580 = vld [vmem:[#allocation2 + $0x80] sm:$0xff]
      %v1581 = vld [vmem:[#allocation2 + $0x88] sm:$0xff]
      %v1582 = vld [vmem:[#allocation2 + $0x90] sm:$0xff]
      %v1583 = vld [vmem:[#allocation2 + $0x98] sm:$0xff]
      %v1584 = vld [vmem:[#allocation2 + $0xa0] sm:$0xff]
      %v1585 = vld [vmem:[#allocation2 + $0xa8] sm:$0xff]
      %v1586 = vld [vmem:[#allocation2 + $0xb0] sm:$0xff]
      %v1587 = vld [vmem:[#allocation2 + $0xb8] sm:$0xff]
      %v1588 = vld [vmem:[#allocation2 + $0xc0] sm:$0xff]
      %v1589 = vld [vmem:[#allocation2 + $0xc8] sm:$0xff]
      %v1590 = vld [vmem:[#allocation2 + $0xd0] sm:$0xff]
      %v1591 = vld [vmem:[#allocation2 + $0xd8] sm:$0xff]
      %v1592 = vld [vmem:[#allocation2 + $0xe0] sm:$0xff]
      %v1593 = vld [vmem:[#allocation2 + $0xe8] sm:$0xff]
      %v1594 = vld [vmem:[#allocation2 + $0xf0] sm:$0xff]
      %v1595 = vld [vmem:[#allocation2 + $0xf8] sm:$0xff]
      %v1596 = vld [vmem:[#allocation2 + $0x100] sm:$0xff]
      %v1597 = vld [vmem:[#allocation2 + $0x108] sm:$0xff]
      %v1598 = vld [vmem:[#allocation2 + $0x110] sm:$0xff]
      %v1599 = vld [vmem:[#allocation2 + $0x118] sm:$0xff]
      %v1600 = vld [vmem:[#allocation2 + $0x120] sm:$0xff]
      %v1601 = vld [vmem:[#allocation2 + $0x128] sm:$0xff]
      %v1602 = vld [vmem:[#allocation2 + $0x130] sm:$0xff]
      %v1603 = vld [vmem:[#allocation2 + $0x138] sm:$0xff]
      %v1604 = vadd.f32 %v1564, %v1565
      %v1605 = vadd.f32 %v1604, %v1566
      %v1606 = vadd.f32 %v1605, %v1567
      %v1607 = vadd.f32 %v1606, %v1568
      %v1608 = vadd.f32 %v1607, %v1569
      %v1609 = vadd.f32 %v1608, %v1570
      %v1610 = vadd.f32 %v1609, %v1571
      %v1611 = vadd.f32 %v1610, %v1572
      %v1612 = vadd.f32 %v1611, %v1573
      %v1613 = vadd.f32 %v1612, %v1574
      %v1614 = vadd.f32 %v1613, %v1575
      %v1615 = vadd.f32 %v1614, %v1576
      %v1616 = vadd.f32 %v1615, %v1577
      %v1617 = vadd.f32 %v1616, %v1578
      %v1618 = vadd.f32 %v1617, %v1579
      %v1619 = vadd.f32 %v1618, %v1580
      %v1620 = vadd.f32 %v1619, %v1581
      %v1621 = vadd.f32 %v1620, %v1582
      %v1622 = vadd.f32 %v1621, %v1583
      %v1623 = vadd.f32 %v1622, %v1584
      %v1624 = vadd.f32 %v1623, %v1585
      %v1625 = vadd.f32 %v1624, %v1586
      %v1626 = vadd.f32 %v1625, %v1587
      %v1627 = vadd.f32 %v1626, %v1588
      %v1628 = vadd.f32 %v1627, %v1589
      %v1629 = vadd.f32 %v1628, %v1590
      %v1630 = vadd.f32 %v1629, %v1591
      %v1631 = vadd.f32 %v1630, %v1592
      %v1632 = vadd.f32 %v1631, %v1593
      %v1633 = vadd.f32 %v1632, %v1594
      %v1634 = vadd.f32 %v1633, %v1595
      %v1635 = vadd.f32 %v1634, %v1596
      %v1636 = vadd.f32 %v1635, %v1597
      %v1637 = vadd.f32 %v1636, %v1598
      %v1638 = vadd.f32 %v1637, %v1599
      %v1639 = vadd.f32 %v1638, %v1600
      %v1640 = vadd.f32 %v1639, %v1601
      %v1641 = vadd.f32 %v1640, %v1602
      %v1642 = vadd.f32 %v1641, %v1603
      %1643 = vadd.xlane.f32.xlu0 %v1642
      %v1644 = vpop.xlane.xlu0 %1643
      %v1645 = vrot.slane %v1644, 4
      %v1646 = vadd.f32 %v1644, %v1645
      %v1647 = vrot.slane %v1646, 2
      %v1648 = vadd.f32 %v1646, %v1647
      %v1649 = vrot.slane %v1648, 1
      %v1650 = vadd.f32 %v1648, %v1649
      %s1651 = vtos %v1650
      %s1652 = scalar_lea.smem [#allocation9], 0
      %1653 = sst [smem:[%s1652]] %s1651
    $region33: #{tpu_custom_call.1} parent=1 // pred_fallthru
      _
    // Predicated region
    $region34: #{tpu_custom_call.1} parent=1 // pred_check
      _
    $region35: #{tpu_custom_call.1} parent=1 // pred_check_branch
      %1655 = sbr.rel (0) target = $region37
    $region36: #{tpu_custom_call.1} parent=1 // pred_region
      %s1657 = ssub.s32 16, 16
      %1658 = vsyncadd [#allocation5], %s1657
      %1661 = dma.smem_to_hbm [#allocation9], 16, %s3, [#allocation5]
    $region37: #{tpu_custom_call.1} parent=1 // pred_fallthru
      _
    // Predicated region
    $region38: #{tpu_custom_call.1} parent=1 // pred_check
      _
    $region39: #{tpu_custom_call.1} parent=1 // pred_check_branch
      %1663 = sbr.rel (0) target = $region41
    $region40: #{tpu_custom_call.1} parent=1 // pred_region
      %1664 = dma.done [#allocation5], 16
    $region41: #{tpu_custom_call.1} parent=1 // pred_fallthru
      _
    %1665 = sfence
    %1666 = vsyncpa [#allocation4], 1
    %1667 = vsyncpa [#allocation7], 1
    %1668 = vsyncpa [#allocation5], 1

</llo_original>
